<compile_context>
chip_gen: v5e
topology: v5e:2x2
jax: 0.10.0
libtpu: 0.0.40
codegen_flags: <defaults>
</compile_context>

<pallas_src>
import math
import functools

import jax
import jax.numpy as jnp
from jax import lax
from jax.experimental import pallas as pl
from jax.experimental.pallas import tpu as pltpu

TIME_EMB = 256          # TimestepEmbedder frequency_embedding_size == hidden_size
HALF = TIME_EMB // 2    # 128 -> sin/cos halves land exactly on one lane-vreg each
LN_EPS = 1e-5


def _round_up(x, m):
    return (x + m - 1) // m * m


def _silu(x):
    return x * jax.nn.sigmoid(x)


def _layernorm_ref(x, eps=LN_EPS):
    mu = jnp.mean(x, axis=-1, keepdims=True)
    var = jnp.mean((x - mu) ** 2, axis=-1, keepdims=True)
    return (x - mu) * lax.rsqrt(var + eps)


def _layernorm_masked(x, n_valid, eps=LN_EPS):
    """LayerNorm over the first n_valid lanes of x (padded lanes must be zero)."""
    n_pad = x.shape[-1]
    if n_valid == n_pad:
        mu = jnp.mean(x, axis=-1, keepdims=True)
        cen = x - mu
        var = jnp.mean(cen * cen, axis=-1, keepdims=True)
    else:
        inv_n = 1.0 / n_valid
        lane = lax.broadcasted_iota(jnp.int32, x.shape, x.ndim - 1)
        valid = lane < n_valid
        mu = jnp.sum(x, axis=-1, keepdims=True) * inv_n
        cen = jnp.where(valid, x - mu, 0.0)
        var = jnp.sum(cen * cen, axis=-1, keepdims=True) * inv_n
    return (x - mu) * lax.rsqrt(var + eps)


def predictor_kernel(t_ref, freqs_ref, tgt_ref, tok_ref,
                     te_w1_ref, te_b1_ref, te_w2_ref, te_b2_ref,
                     wfi_ref, bfi_ref,
                     ln_g_ref, ln_b_ref, bw1_ref, bb1_ref, bw2_ref, bb2_ref,
                     wo_ref, bo_ref,
                     act_ref, out_ref,
                     x_acc,
                     *, hidden_dim):
    j = pl.program_id(1)
    last = pl.num_programs(1) - 1

    # --- block 0 only: timestep embedding MLP + fused fc_in ---
    @pl.when(j == 0)
    def _():
        args = t_ref[...] * freqs_ref[...]                                # (TB, 128)
        emb = jnp.concatenate([jnp.cos(args), jnp.sin(args)], axis=-1)    # (TB, 256)
        h = jnp.dot(emb, te_w1_ref[...],
                    preferred_element_type=jnp.float32) + te_b1_ref[...]
        h = _silu(h)
        t_emb = jnp.dot(h, te_w2_ref[...],
                        preferred_element_type=jnp.float32) + te_b2_ref[...]
        # concat([target | t_emb | input_token]) on 128-aligned segments, then
        # a single fused fc_in matmul (padded K).
        xin = jnp.concatenate([tgt_ref[...], t_emb, tok_ref[...]], axis=-1)
        x_acc[...] = (jnp.dot(xin, wfi_ref[...],
                              preferred_element_type=jnp.float32) + bfi_ref[...])

    # --- SimbaBlock j (weights for block j streamed this grid step) ---
    # TODO(synk): SimbaBlock source not provided; assumed the standard SimBa residual
    # block: pre-LayerNorm(affine) -> Linear(h, 4h) -> ReLU -> Linear(4h, h) -> +residual.
    x = x_acc[...]
    y = _layernorm_masked(x, hidden_dim) * ln_g_ref[...] + ln_b_ref[...]
    y = jnp.dot(y, bw1_ref[...], preferred_element_type=jnp.float32) + bb1_ref[...]
    y = jnp.maximum(y, 0.0)
    y = jnp.dot(y, bw2_ref[...], preferred_element_type=jnp.float32) + bb2_ref[...]
    x_acc[...] = x + y

    # --- last block only: final (non-affine) LayerNorm + fc_out ---
    @pl.when(j == last)
    def _():
        xn = _layernorm_masked(x_acc[...], hidden_dim)
        act_ref[...] = xn                                   # result_dict['activation']
        out_ref[...] = (jnp.dot(xn, wo_ref[...],
                                preferred_element_type=jnp.float32) + bo_ref[...])


def diffusion_state_predictor(target, t, input_token, params, *, block_num,
                              batch_tile=256):
    assert block_num >= 1
    N, state_dim = target.shape
    input_dim = input_token.shape[1]
    hidden_dim = params["fc_in_w"].shape[1]
    h4 = params["bw1"].shape[2]

    # Lane-dense padding: all feature dims become multiples of 128.
    S_pad = _round_up(state_dim, 128)
    I_pad = _round_up(input_dim, 128)
    H_pad = _round_up(hidden_dim, 128)
    H4_pad = _round_up(h4, 128)
    K_pad = S_pad + TIME_EMB + I_pad

    # Batch tiling (multiple of 8 sublanes for f32).
    N8 = _round_up(N, 8)
    TB = min(_round_up(batch_tile, 8), N8)
    N_pad = _round_up(N, TB)

    f32 = jnp.float32
    t2d = jnp.pad(t.astype(f32).reshape(N, 1), ((0, N_pad - N), (0, 0)))
    tgt_p = jnp.pad(target.astype(f32), ((0, N_pad - N), (0, S_pad - state_dim)))
    tok_p = jnp.pad(input_token.astype(f32), ((0, N_pad - N), (0, I_pad - input_dim)))

    # Precomputed sinusoidal frequency row (host-side; removes in-kernel iota+exp).
    freqs = jnp.exp(-math.log(10000.0) *
                    jnp.arange(HALF, dtype=f32) / HALF).reshape(1, HALF)

    # TODO(synk): in a real deployment, pad the weights once outside the step
    # function rather than on every call.
    te_w1 = params["te_w1"].astype(f32)
    te_b1 = params["te_b1"].reshape(1, TIME_EMB).astype(f32)
    te_w2 = params["te_w2"].astype(f32)
    te_b2 = params["te_b2"].reshape(1, TIME_EMB).astype(f32)

    w = params["fc_in_w"].astype(f32)                       # (state+256+input, hidden)
    wfi = jnp.zeros((K_pad, H_pad), f32)
    wfi = wfi.at[:state_dim, :hidden_dim].set(w[:state_dim])
    wfi = wfi.at[S_pad:S_pad + TIME_EMB, :hidden_dim].set(
        w[state_dim:state_dim + TIME_EMB])
    wfi = wfi.at[S_pad + TIME_EMB:S_pad + TIME_EMB + input_dim, :hidden_dim].set(
        w[state_dim + TIME_EMB:])
    bfi = jnp.zeros((1, H_pad), f32).at[0, :hidden_dim].set(params["fc_in_b"])

    ln_g = jnp.zeros((block_num, 1, H_pad), f32).at[:, 0, :hidden_dim].set(params["ln_g"])
    ln_b = jnp.zeros((block_num, 1, H_pad), f32).at[:, 0, :hidden_dim].set(params["ln_b"])
    bw1 = jnp.zeros((block_num, H_pad, H4_pad), f32).at[:, :hidden_dim, :h4].set(params["bw1"])
    bb1 = jnp.zeros((block_num, 1, H4_pad), f32).at[:, 0, :h4].set(params["bb1"])
    bw2 = jnp.zeros((block_num, H4_pad, H_pad), f32).at[:, :h4, :hidden_dim].set(params["bw2"])
    bb2 = jnp.zeros((block_num, 1, H_pad), f32).at[:, 0, :hidden_dim].set(params["bb2"])
    wo = jnp.zeros((H_pad, S_pad), f32).at[:hidden_dim, :state_dim].set(params["wo"])
    bo = jnp.zeros((1, S_pad), f32).at[0, :state_dim].set(params["bo"])

    batch_map = lambda i, j: (i, 0)      # activations: tiled over batch, same for all blocks
    const_map = lambda i, j: (0, 0)      # shared weights: resident (DMA skipped on revisit)
    block_map = lambda i, j: (j, 0, 0)   # per-block weights: streamed along the block axis

    in_specs = [
        pl.BlockSpec((TB, 1), batch_map),                 # t
        pl.BlockSpec((1, HALF), const_map),               # freqs
        pl.BlockSpec((TB, S_pad), batch_map),             # target
        pl.BlockSpec((TB, I_pad), batch_map),             # input_token
        pl.BlockSpec((TIME_EMB, TIME_EMB), const_map),    # te_w1
        pl.BlockSpec((1, TIME_EMB), const_map),           # te_b1
        pl.BlockSpec((TIME_EMB, TIME_EMB), const_map),    # te_w2
        pl.BlockSpec((1, TIME_EMB), const_map),           # te_b2
        pl.BlockSpec((K_pad, H_pad), const_map),          # fused fc_in weight
        pl.BlockSpec((1, H_pad), const_map),              # fc_in bias
        pl.BlockSpec((None, 1, H_pad), block_map),        # ln_g
        pl.BlockSpec((None, 1, H_pad), block_map),        # ln_b
        pl.BlockSpec((None, H_pad, H4_pad), block_map),   # bw1
        pl.BlockSpec((None, 1, H4_pad), block_map),       # bb1
        pl.BlockSpec((None, H4_pad, H_pad), block_map),   # bw2
        pl.BlockSpec((None, 1, H_pad), block_map),        # bb2
        pl.BlockSpec((H_pad, S_pad), const_map),          # wo
        pl.BlockSpec((1, S_pad), const_map),              # bo
    ]
    out_specs = (pl.BlockSpec((TB, H_pad), batch_map),    # activation
                 pl.BlockSpec((TB, S_pad), batch_map))    # output

    grid_spec = pltpu.PrefetchScalarGridSpec(
        num_scalar_prefetch=0,
        grid=(N_pad // TB, block_num),
        in_specs=in_specs,
        out_specs=out_specs,
        scratch_shapes=[pltpu.VMEM((TB, H_pad), f32)],    # residual-stream accumulator
    )

    act_p, out_p = pl.pallas_call(
        functools.partial(predictor_kernel, hidden_dim=hidden_dim),
        out_shape=(jax.ShapeDtypeStruct((N_pad, H_pad), f32),
                   jax.ShapeDtypeStruct((N_pad, S_pad), f32)),
        grid_spec=grid_spec,
        compiler_params=pltpu.CompilerParams(
            dimension_semantics=("parallel", "arbitrary"),
            vmem_limit_bytes=32 * 1024 * 1024),
    )(t2d, freqs, tgt_p, tok_p,
      te_w1, te_b1, te_w2, te_b2,
      wfi, bfi, ln_g, ln_b, bw1, bb1, bw2, bb2, wo, bo)

    return {"activation": act_p[:N, :hidden_dim], "output": out_p[:N, :state_dim]}


def ref_forward(target, t, input_token, params, block_num):
    """Pure-JAX reference mirroring the PyTorch forward."""
    freqs = jnp.exp(-math.log(10000.0) * jnp.arange(HALF, dtype=jnp.float32) / HALF)
    args = t[:, None].astype(jnp.float32) * freqs[None]
    emb = jnp.concatenate([jnp.cos(args), jnp.sin(args)], axis=-1)
    h = emb @ params["te_w1"] + params["te_b1"]
    h = h * jax.nn.sigmoid(h)
    t_emb = h @ params["te_w2"] + params["te_b2"]
    x = (jnp.concatenate([target, t_emb, input_token], axis=1) @ params["fc_in_w"]
         + params["fc_in_b"])
    for i in range(block_num):
        y = _layernorm_ref(x) * params["ln_g"][i] + params["ln_b"][i]
        y = jnp.maximum(y @ params["bw1"][i] + params["bb1"][i], 0.0)
        y = y @ params["bw2"][i] + params["bb2"][i]
        x = x + y
    x = _layernorm_ref(x)
    out = x @ params["wo"] + params["bo"]
    return x, out


if __name__ == "__main__":
    key = jax.random.PRNGKey(0)
    N, input_dim, state_dim, hidden_dim, block_num = 8, 32, 16, 32, 2
    ks = jax.random.split(key, 20)

    def w(k, shape, fan_in):
        bound = 1.0 / math.sqrt(fan_in)
        return jax.random.uniform(k, shape, jnp.float32, -bound, bound)

    d_in = state_dim + TIME_EMB + input_dim   # fc_in fan-in, torch concat order
    h4 = 4 * hidden_dim
    params = dict(
        # TimestepEmbedder MLP (weights stored (in, out); biases (out,))
        te_w1=w(ks[0], (TIME_EMB, TIME_EMB), TIME_EMB),
        te_b1=w(ks[1], (TIME_EMB,), TIME_EMB),
        te_w2=w(ks[2], (TIME_EMB, TIME_EMB), TIME_EMB),
        te_b2=w(ks[3], (TIME_EMB,), TIME_EMB),
        # fc_in over concat([target | t_emb | input_token])
        fc_in_w=w(ks[4], (d_in, hidden_dim), d_in),
        fc_in_b=w(ks[5], (hidden_dim,), d_in),
        # SimbaBlocks (stacked over block_num)
        ln_g=1.0 + 0.1 * jax.random.normal(ks[6], (block_num, hidden_dim), jnp.float32),
        ln_b=0.1 * jax.random.normal(ks[7], (block_num, hidden_dim), jnp.float32),
        bw1=w(ks[8], (block_num, hidden_dim, h4), hidden_dim),
        bb1=w(ks[9], (block_num, h4), hidden_dim),
        bw2=w(ks[10], (block_num, h4, hidden_dim), h4),
        bb2=w(ks[11], (block_num, hidden_dim), h4),
        # fc_out
        wo=w(ks[12], (hidden_dim, state_dim), hidden_dim),
        bo=w(ks[13], (state_dim,), hidden_dim),
    )

    target = jax.random.normal(ks[14], (N, state_dim), jnp.float32)
    input_token = jax.random.normal(ks[15], (N, input_dim), jnp.float32)
    t = jax.random.uniform(ks[16], (N,), jnp.float32)

    result = diffusion_state_predictor(target, t, input_token, params,
                                       block_num=block_num)
    jax.block_until_ready(result)

    act_r, out_r = ref_forward(target, t, input_token, params, block_num)
    assert jnp.allclose(result["activation"], act_r, atol=1e-4, rtol=1e-4)
    assert jnp.allclose(result["output"], out_r, atol=1e-4, rtol=1e-4)

    print("KERNEL_OK")
</pallas_src>

<mosaic_0001>
module attributes {stable_mosaic.version = 11 : i64} {
  func.func @predictor_kernel(%arg0: i32, %arg1: i32, %arg2: memref<8x1xf32, #tpu.memory_space<vmem>>, %arg3: memref<1x128xf32, #tpu.memory_space<vmem>>, %arg4: memref<8x128xf32, #tpu.memory_space<vmem>>, %arg5: memref<8x128xf32, #tpu.memory_space<vmem>>, %arg6: memref<256x256xf32, #tpu.memory_space<vmem>>, %arg7: memref<1x256xf32, #tpu.memory_space<vmem>>, %arg8: memref<256x256xf32, #tpu.memory_space<vmem>>, %arg9: memref<1x256xf32, #tpu.memory_space<vmem>>, %arg10: memref<512x128xf32, #tpu.memory_space<vmem>>, %arg11: memref<1x128xf32, #tpu.memory_space<vmem>>, %arg12: memref<1x1x128xf32, #tpu.memory_space<vmem>>, %arg13: memref<1x1x128xf32, #tpu.memory_space<vmem>>, %arg14: memref<1x128x128xf32, #tpu.memory_space<vmem>>, %arg15: memref<1x1x128xf32, #tpu.memory_space<vmem>>, %arg16: memref<1x128x128xf32, #tpu.memory_space<vmem>>, %arg17: memref<1x1x128xf32, #tpu.memory_space<vmem>>, %arg18: memref<128x128xf32, #tpu.memory_space<vmem>>, %arg19: memref<1x128xf32, #tpu.memory_space<vmem>>, %arg20: memref<8x128xf32, #tpu.memory_space<vmem>>, %arg21: memref<8x128xf32, #tpu.memory_space<vmem>>, %arg22: memref<8x128xf32, #tpu.memory_space<vmem>>) attributes {dimension_semantics = [#tpu.dimension_semantics<parallel>, #tpu.dimension_semantics<arbitrary>], iteration_bounds = array<i64: 1, 2>, scalar_prefetch = 0 : i64, scratch_operands = 1 : i64, tpu.core_type = #tpu.core_type<tc>, window_params = [{transform_indices = @transform_0, window_bounds = array<i64: 8, 1>}, {pipeline_mode = #tpu.pipeline_mode<synchronous>, transform_indices = @transform_1, window_bounds = array<i64: 1, 128>}, {transform_indices = @transform_2, window_bounds = array<i64: 8, 128>}, {transform_indices = @transform_3, window_bounds = array<i64: 8, 128>}, {pipeline_mode = #tpu.pipeline_mode<synchronous>, transform_indices = @transform_4, window_bounds = array<i64: 256, 256>}, {pipeline_mode = #tpu.pipeline_mode<synchronous>, transform_indices = @transform_5, window_bounds = array<i64: 1, 256>}, {pipeline_mode = #tpu.pipeline_mode<synchronous>, transform_indices = @transform_6, window_bounds = array<i64: 256, 256>}, {pipeline_mode = #tpu.pipeline_mode<synchronous>, transform_indices = @transform_7, window_bounds = array<i64: 1, 256>}, {pipeline_mode = #tpu.pipeline_mode<synchronous>, transform_indices = @transform_8, window_bounds = array<i64: 512, 128>}, {pipeline_mode = #tpu.pipeline_mode<synchronous>, transform_indices = @transform_9, window_bounds = array<i64: 1, 128>}, {transform_indices = @transform_10, window_bounds = array<i64: 1, 1, 128>}, {transform_indices = @transform_11, window_bounds = array<i64: 1, 1, 128>}, {transform_indices = @transform_12, window_bounds = array<i64: 1, 128, 128>}, {transform_indices = @transform_13, window_bounds = array<i64: 1, 1, 128>}, {transform_indices = @transform_14, window_bounds = array<i64: 1, 128, 128>}, {transform_indices = @transform_15, window_bounds = array<i64: 1, 1, 128>}, {pipeline_mode = #tpu.pipeline_mode<synchronous>, transform_indices = @transform_16, window_bounds = array<i64: 128, 128>}, {pipeline_mode = #tpu.pipeline_mode<synchronous>, transform_indices = @transform_17, window_bounds = array<i64: 1, 128>}, {transform_indices = @transform_18, window_bounds = array<i64: 8, 128>}, {transform_indices = @transform_19, window_bounds = array<i64: 8, 128>}]} {
    %c0_i32 = arith.constant 0 : i32
    %0 = arith.cmpi eq, %arg1, %c0_i32 : i32
    %1 = arith.extui %0 : i1 to i32
    %c0_i32_0 = arith.constant 0 : i32
    %2 = arith.cmpi ne, %1, %c0_i32_0 : i32
    scf.if %2 {
      %c0_31 = arith.constant 0 : index
      %c0_32 = arith.constant 0 : index
      %56 = vector.load %arg2[%c0_31, %c0_32] : memref<8x1xf32, #tpu.memory_space<vmem>>, vector<8x1xf32>
      %c0_33 = arith.constant 0 : index
      %c0_34 = arith.constant 0 : index
      %57 = vector.load %arg3[%c0_33, %c0_34] : memref<1x128xf32, #tpu.memory_space<vmem>>, vector<1x128xf32>
      %58 = vector.broadcast %56 : vector<8x1xf32> to vector<8x128xf32>
      %59 = vector.broadcast %57 : vector<1x128xf32> to vector<8x128xf32>
      %60 = arith.mulf %58, %59 : vector<8x128xf32>
      %61 = math.cos %60 : vector<8x128xf32>
      %62 = math.sin %60 : vector<8x128xf32>
      %63 = tpu.concatenate %61, %62 in 1 : vector<8x128xf32>, vector<8x128xf32> -> vector<8x256xf32>
      %c0_35 = arith.constant 0 : index
      %c0_36 = arith.constant 0 : index
      %64 = vector.load %arg6[%c0_35, %c0_36] : memref<256x256xf32, #tpu.memory_space<vmem>>, vector<256x256xf32>
      %cst_37 = arith.constant dense<0.000000e+00> : vector<8x256xf32>
      %65 = tpu.matmul %63, %64, %cst_37 {dimension_numbers = #tpu.dot_dimension_numbers<[1], [0], [0], [1], [0, 0, 1, 1], [], []>} : vector<8x256xf32>, vector<256x256xf32>, vector<8x256xf32> -> vector<8x256xf32>
      %c0_38 = arith.constant 0 : index
      %c0_39 = arith.constant 0 : index
      %66 = vector.load %arg7[%c0_38, %c0_39] : memref<1x256xf32, #tpu.memory_space<vmem>>, vector<1x256xf32>
      %67 = vector.broadcast %66 : vector<1x256xf32> to vector<8x256xf32>
      %68 = arith.addf %65, %67 : vector<8x256xf32>
      %69 = arith.negf %68 : vector<8x256xf32>
      %70 = math.exp %69 : vector<8x256xf32>
      %cst_40 = arith.constant 1.000000e+00 : f32
      %71 = vector.broadcast %cst_40 : f32 to vector<8x256xf32>
      %72 = arith.addf %71, %70 : vector<8x256xf32>
      %73 = arith.divf %71, %72 : vector<8x256xf32>
      %74 = arith.mulf %68, %73 : vector<8x256xf32>
      %c0_41 = arith.constant 0 : index
      %c0_42 = arith.constant 0 : index
      %75 = vector.load %arg8[%c0_41, %c0_42] : memref<256x256xf32, #tpu.memory_space<vmem>>, vector<256x256xf32>
      %cst_43 = arith.constant dense<0.000000e+00> : vector<8x256xf32>
      %76 = tpu.matmul %74, %75, %cst_43 {dimension_numbers = #tpu.dot_dimension_numbers<[1], [0], [0], [1], [0, 0, 1, 1], [], []>} : vector<8x256xf32>, vector<256x256xf32>, vector<8x256xf32> -> vector<8x256xf32>
      %c0_44 = arith.constant 0 : index
      %c0_45 = arith.constant 0 : index
      %77 = vector.load %arg9[%c0_44, %c0_45] : memref<1x256xf32, #tpu.memory_space<vmem>>, vector<1x256xf32>
      %78 = vector.broadcast %77 : vector<1x256xf32> to vector<8x256xf32>
      %79 = arith.addf %76, %78 : vector<8x256xf32>
      %c0_46 = arith.constant 0 : index
      %c0_47 = arith.constant 0 : index
      %80 = vector.load %arg4[%c0_46, %c0_47] : memref<8x128xf32, #tpu.memory_space<vmem>>, vector<8x128xf32>
      %c0_48 = arith.constant 0 : index
      %c0_49 = arith.constant 0 : index
      %81 = vector.load %arg5[%c0_48, %c0_49] : memref<8x128xf32, #tpu.memory_space<vmem>>, vector<8x128xf32>
      %82 = tpu.concatenate %80, %79, %81 in 1 : vector<8x128xf32>, vector<8x256xf32>, vector<8x128xf32> -> vector<8x512xf32>
      %c0_50 = arith.constant 0 : index
      %c0_51 = arith.constant 0 : index
      %83 = vector.load %arg10[%c0_50, %c0_51] : memref<512x128xf32, #tpu.memory_space<vmem>>, vector<512x128xf32>
      %cst_52 = arith.constant dense<0.000000e+00> : vector<8x128xf32>
      %84 = tpu.matmul %82, %83, %cst_52 {dimension_numbers = #tpu.dot_dimension_numbers<[1], [0], [0], [1], [0, 0, 1, 1], [], []>} : vector<8x512xf32>, vector<512x128xf32>, vector<8x128xf32> -> vector<8x128xf32>
      %c0_53 = arith.constant 0 : index
      %c0_54 = arith.constant 0 : index
      %85 = vector.load %arg11[%c0_53, %c0_54] : memref<1x128xf32, #tpu.memory_space<vmem>>, vector<1x128xf32>
      %86 = vector.broadcast %85 : vector<1x128xf32> to vector<8x128xf32>
      %87 = arith.addf %84, %86 : vector<8x128xf32>
      %c0_55 = arith.constant 0 : index
      %c0_56 = arith.constant 0 : index
      %88 = vector.load %arg22[%c0_55, %c0_56] : memref<8x128xf32, #tpu.memory_space<vmem>>, vector<8x128xf32>
      tpu.vector_store %arg22[%c0_55, %c0_56], %87 {strides = array<i32>} : memref<8x128xf32, #tpu.memory_space<vmem>>, vector<8x128xf32>,
    } else {
    }
    %c0 = arith.constant 0 : index
    %c0_1 = arith.constant 0 : index
    %3 = vector.load %arg22[%c0, %c0_1] : memref<8x128xf32, #tpu.memory_space<vmem>>, vector<8x128xf32>
    %4 = tpu.iota {dimensions = array<i32: 1>} : vector<8x128xi32>
    %c32_i32 = arith.constant 32 : i32
    %5 = vector.broadcast %c32_i32 : i32 to vector<8x128xi32>
    %6 = arith.cmpi slt, %4, %5 : vector<8x128xi32>
    %cst = arith.constant dense<0.000000e+00> : vector<8xf32>
    %7 = vector.multi_reduction <add>, %3, %cst [1] : vector<8x128xf32> to vector<8xf32>
    %8 = vector.shape_cast %7 : vector<8xf32> to vector<8x1xf32>
    %cst_2 = arith.constant 3.125000e-02 : f32
    %9 = vector.broadcast %cst_2 : f32 to vector<8x1xf32>
    %10 = arith.mulf %8, %9 : vector<8x1xf32>
    %11 = vector.broadcast %10 : vector<8x1xf32> to vector<8x128xf32>
    %12 = arith.subf %3, %11 : vector<8x128xf32>
    %cst_3 = arith.constant 0.000000e+00 : f32
    %13 = vector.broadcast %cst_3 : f32 to vector<8x128xf32>
    %14 = arith.select %6, %12, %13 : vector<8x128xi1>, vector<8x128xf32>
    %15 = arith.mulf %14, %14 : vector<8x128xf32>
    %cst_4 = arith.constant dense<0.000000e+00> : vector<8xf32>
    %16 = vector.multi_reduction <add>, %15, %cst_4 [1] : vector<8x128xf32> to vector<8xf32>
    %17 = vector.shape_cast %16 : vector<8xf32> to vector<8x1xf32>
    %cst_5 = arith.constant 3.125000e-02 : f32
    %18 = vector.broadcast %cst_5 : f32 to vector<8x1xf32>
    %19 = arith.mulf %17, %18 : vector<8x1xf32>
    %20 = vector.broadcast %10 : vector<8x1xf32> to vector<8x128xf32>
    %21 = arith.subf %3, %20 : vector<8x128xf32>
    %cst_6 = arith.constant 9.99999974E-6 : f32
    %22 = vector.broadcast %cst_6 : f32 to vector<8x1xf32>
    %23 = arith.addf %19, %22 : vector<8x1xf32>
    %24 = math.rsqrt %23 : vector<8x1xf32>
    %25 = vector.broadcast %24 : vector<8x1xf32> to vector<8x128xf32>
    %26 = arith.mulf %21, %25 : vector<8x128xf32>
    %c0_7 = arith.constant 0 : index
    %c0_8 = arith.constant 0 : index
    %c0_9 = arith.constant 0 : index
    %27 = vector.load %arg12[%c0_7, %c0_8, %c0_9] : memref<1x1x128xf32, #tpu.memory_space<vmem>>, vector<1x1x128xf32>
    %28 = vector.shape_cast %27 : vector<1x1x128xf32> to vector<1x128xf32>
    %29 = vector.broadcast %28 : vector<1x128xf32> to vector<8x128xf32>
    %30 = arith.mulf %26, %29 : vector<8x128xf32>
    %c0_10 = arith.constant 0 : index
    %c0_11 = arith.constant 0 : index
    %c0_12 = arith.constant 0 : index
    %31 = vector.load %arg13[%c0_10, %c0_11, %c0_12] : memref<1x1x128xf32, #tpu.memory_space<vmem>>, vector<1x1x128xf32>
    %32 = vector.shape_cast %31 : vector<1x1x128xf32> to vector<1x128xf32>
    %33 = vector.broadcast %32 : vector<1x128xf32> to vector<8x128xf32>
    %34 = arith.addf %30, %33 : vector<8x128xf32>
    %c0_13 = arith.constant 0 : index
    %c0_14 = arith.constant 0 : index
    %c0_15 = arith.constant 0 : index
    %35 = vector.load %arg14[%c0_13, %c0_14, %c0_15] : memref<1x128x128xf32, #tpu.memory_space<vmem>>, vector<1x128x128xf32>
    %36 = vector.shape_cast %35 : vector<1x128x128xf32> to vector<128x128xf32>
    %cst_16 = arith.constant dense<0.000000e+00> : vector<8x128xf32>
    %37 = tpu.matmul %34, %36, %cst_16 {dimension_numbers = #tpu.dot_dimension_numbers<[1], [0], [0], [1], [0, 0, 1, 1], [], []>} : vector<8x128xf32>, vector<128x128xf32>, vector<8x128xf32> -> vector<8x128xf32>
    %c0_17 = arith.constant 0 : index
    %c0_18 = arith.constant 0 : index
    %c0_19 = arith.constant 0 : index
    %38 = vector.load %arg15[%c0_17, %c0_18, %c0_19] : memref<1x1x128xf32, #tpu.memory_space<vmem>>, vector<1x1x128xf32>
    %39 = vector.shape_cast %38 : vector<1x1x128xf32> to vector<1x128xf32>
    %40 = vector.broadcast %39 : vector<1x128xf32> to vector<8x128xf32>
    %41 = arith.addf %37, %40 : vector<8x128xf32>
    %cst_20 = arith.constant 0.000000e+00 : f32
    %42 = vector.broadcast %cst_20 : f32 to vector<8x128xf32>
    %43 = arith.maximumf %41, %42 : vector<8x128xf32>
    %c0_21 = arith.constant 0 : index
    %c0_22 = arith.constant 0 : index
    %c0_23 = arith.constant 0 : index
    %44 = vector.load %arg16[%c0_21, %c0_22, %c0_23] : memref<1x128x128xf32, #tpu.memory_space<vmem>>, vector<1x128x128xf32>
    %45 = vector.shape_cast %44 : vector<1x128x128xf32> to vector<128x128xf32>
    %cst_24 = arith.constant dense<0.000000e+00> : vector<8x128xf32>
    %46 = tpu.matmul %43, %45, %cst_24 {dimension_numbers = #tpu.dot_dimension_numbers<[1], [0], [0], [1], [0, 0, 1, 1], [], []>} : vector<8x128xf32>, vector<128x128xf32>, vector<8x128xf32> -> vector<8x128xf32>
    %c0_25 = arith.constant 0 : index
    %c0_26 = arith.constant 0 : index
    %c0_27 = arith.constant 0 : index
    %47 = vector.load %arg17[%c0_25, %c0_26, %c0_27] : memref<1x1x128xf32, #tpu.memory_space<vmem>>, vector<1x1x128xf32>
    %48 = vector.shape_cast %47 : vector<1x1x128xf32> to vector<1x128xf32>
    %49 = vector.broadcast %48 : vector<1x128xf32> to vector<8x128xf32>
    %50 = arith.addf %46, %49 : vector<8x128xf32>
    %51 = arith.addf %3, %50 : vector<8x128xf32>
    %c0_28 = arith.constant 0 : index
    %c0_29 = arith.constant 0 : index
    %52 = vector.load %arg22[%c0_28, %c0_29] : memref<8x128xf32, #tpu.memory_space<vmem>>, vector<8x128xf32>
    tpu.vector_store %arg22[%c0_28, %c0_29], %51 {strides = array<i32>} : memref<8x128xf32, #tpu.memory_space<vmem>>, vector<8x128xf32>,
    %c1_i32 = arith.constant 1 : i32
    %53 = arith.cmpi eq, %arg1, %c1_i32 : i32
    %54 = arith.extui %53 : i1 to i32
    %c0_i32_30 = arith.constant 0 : i32
    %55 = arith.cmpi ne, %54, %c0_i32_30 : i32
    scf.if %55 {
      %c0_31 = arith.constant 0 : index
      %c0_32 = arith.constant 0 : index
      %56 = vector.load %arg22[%c0_31, %c0_32] : memref<8x128xf32, #tpu.memory_space<vmem>>, vector<8x128xf32>
      %57 = tpu.iota {dimensions = array<i32: 1>} : vector<8x128xi32>
      %c32_i32_33 = arith.constant 32 : i32
      %58 = vector.broadcast %c32_i32_33 : i32 to vector<8x128xi32>
      %59 = arith.cmpi slt, %57, %58 : vector<8x128xi32>
      %cst_34 = arith.constant dense<0.000000e+00> : vector<8xf32>
      %60 = vector.multi_reduction <add>, %56, %cst_34 [1] : vector<8x128xf32> to vector<8xf32>
      %61 = vector.shape_cast %60 : vector<8xf32> to vector<8x1xf32>
      %cst_35 = arith.constant 3.125000e-02 : f32
      %62 = vector.broadcast %cst_35 : f32 to vector<8x1xf32>
      %63 = arith.mulf %61, %62 : vector<8x1xf32>
      %64 = vector.broadcast %63 : vector<8x1xf32> to vector<8x128xf32>
      %65 = arith.subf %56, %64 : vector<8x128xf32>
      %cst_36 = arith.constant 0.000000e+00 : f32
      %66 = vector.broadcast %cst_36 : f32 to vector<8x128xf32>
      %67 = arith.select %59, %65, %66 : vector<8x128xi1>, vector<8x128xf32>
      %68 = arith.mulf %67, %67 : vector<8x128xf32>
      %cst_37 = arith.constant dense<0.000000e+00> : vector<8xf32>
      %69 = vector.multi_reduction <add>, %68, %cst_37 [1] : vector<8x128xf32> to vector<8xf32>
      %70 = vector.shape_cast %69 : vector<8xf32> to vector<8x1xf32>
      %cst_38 = arith.constant 3.125000e-02 : f32
      %71 = vector.broadcast %cst_38 : f32 to vector<8x1xf32>
      %72 = arith.mulf %70, %71 : vector<8x1xf32>
      %73 = vector.broadcast %63 : vector<8x1xf32> to vector<8x128xf32>
      %74 = arith.subf %56, %73 : vector<8x128xf32>
      %cst_39 = arith.constant 9.99999974E-6 : f32
      %75 = vector.broadcast %cst_39 : f32 to vector<8x1xf32>
      %76 = arith.addf %72, %75 : vector<8x1xf32>
      %77 = math.rsqrt %76 : vector<8x1xf32>
      %78 = vector.broadcast %77 : vector<8x1xf32> to vector<8x128xf32>
      %79 = arith.mulf %74, %78 : vector<8x128xf32>
      %c0_40 = arith.constant 0 : index
      %c0_41 = arith.constant 0 : index
      %80 = vector.load %arg20[%c0_40, %c0_41] : memref<8x128xf32, #tpu.memory_space<vmem>>, vector<8x128xf32>
      tpu.vector_store %arg20[%c0_40, %c0_41], %79 {strides = array<i32>} : memref<8x128xf32, #tpu.memory_space<vmem>>, vector<8x128xf32>,
      %c0_42 = arith.constant 0 : index
      %c0_43 = arith.constant 0 : index
      %81 = vector.load %arg18[%c0_42, %c0_43] : memref<128x128xf32, #tpu.memory_space<vmem>>, vector<128x128xf32>
      %cst_44 = arith.constant dense<0.000000e+00> : vector<8x128xf32>
      %82 = tpu.matmul %79, %81, %cst_44 {dimension_numbers = #tpu.dot_dimension_numbers<[1], [0], [0], [1], [0, 0, 1, 1], [], []>} : vector<8x128xf32>, vector<128x128xf32>, vector<8x128xf32> -> vector<8x128xf32>
      %c0_45 = arith.constant 0 : index
      %c0_46 = arith.constant 0 : index
      %83 = vector.load %arg19[%c0_45, %c0_46] : memref<1x128xf32, #tpu.memory_space<vmem>>, vector<1x128xf32>
      %84 = vector.broadcast %83 : vector<1x128xf32> to vector<8x128xf32>
      %85 = arith.addf %82, %84 : vector<8x128xf32>
      %c0_47 = arith.constant 0 : index
      %c0_48 = arith.constant 0 : index
      %86 = vector.load %arg21[%c0_47, %c0_48] : memref<8x128xf32, #tpu.memory_space<vmem>>, vector<8x128xf32>
      tpu.vector_store %arg21[%c0_47, %c0_48], %85 {strides = array<i32>} : memref<8x128xf32, #tpu.memory_space<vmem>>, vector<8x128xf32>,
    } else {
    }
    return
  }
  func.func @transform_0(%arg0: i32, %arg1: i32) -> (i32, i32) {
    %c0_i32 = arith.constant 0 : i32
    %c0_i32_0 = arith.constant 0 : i32
    return %arg0, %c0_i32 : i32, i32
  }
  func.func @transform_1(%arg0: i32, %arg1: i32) -> (i32, i32) {
    %c0_i32 = arith.constant 0 : i32
    %c0_i32_0 = arith.constant 0 : i32
    %c0_i32_1 = arith.constant 0 : i32
    return %c0_i32, %c0_i32_0 : i32, i32
  }
  func.func @transform_2(%arg0: i32, %arg1: i32) -> (i32, i32) {
    %c0_i32 = arith.constant 0 : i32
    %c0_i32_0 = arith.constant 0 : i32
    return %arg0, %c0_i32 : i32, i32
  }
  func.func @transform_3(%arg0: i32, %arg1: i32) -> (i32, i32) {
    %c0_i32 = arith.constant 0 : i32
    %c0_i32_0 = arith.constant 0 : i32
    return %arg0, %c0_i32 : i32, i32
  }
  func.func @transform_4(%arg0: i32, %arg1: i32) -> (i32, i32) {
    %c0_i32 = arith.constant 0 : i32
    %c0_i32_0 = arith.constant 0 : i32
    %c0_i32_1 = arith.constant 0 : i32
    return %c0_i32, %c0_i32_0 : i32, i32
  }
  func.func @transform_5(%arg0: i32, %arg1: i32) -> (i32, i32) {
    %c0_i32 = arith.constant 0 : i32
    %c0_i32_0 = arith.constant 0 : i32
    %c0_i32_1 = arith.constant 0 : i32
    return %c0_i32, %c0_i32_0 : i32, i32
  }
  func.func @transform_6(%arg0: i32, %arg1: i32) -> (i32, i32) {
    %c0_i32 = arith.constant 0 : i32
    %c0_i32_0 = arith.constant 0 : i32
    %c0_i32_1 = arith.constant 0 : i32
    return %c0_i32, %c0_i32_0 : i32, i32
  }
  func.func @transform_7(%arg0: i32, %arg1: i32) -> (i32, i32) {
    %c0_i32 = arith.constant 0 : i32
    %c0_i32_0 = arith.constant 0 : i32
    %c0_i32_1 = arith.constant 0 : i32
    return %c0_i32, %c0_i32_0 : i32, i32
  }
  func.func @transform_8(%arg0: i32, %arg1: i32) -> (i32, i32) {
    %c0_i32 = arith.constant 0 : i32
    %c0_i32_0 = arith.constant 0 : i32
    %c0_i32_1 = arith.constant 0 : i32
    return %c0_i32, %c0_i32_0 : i32, i32
  }
  func.func @transform_9(%arg0: i32, %arg1: i32) -> (i32, i32) {
    %c0_i32 = arith.constant 0 : i32
    %c0_i32_0 = arith.constant 0 : i32
    %c0_i32_1 = arith.constant 0 : i32
    return %c0_i32, %c0_i32_0 : i32, i32
  }
  func.func @transform_10(%arg0: i32, %arg1: i32) -> (i32, i32, i32) {
    %c0_i32 = arith.constant 0 : i32
    %c0_i32_0 = arith.constant 0 : i32
    %c0_i32_1 = arith.constant 0 : i32
    return %arg1, %c0_i32, %c0_i32_0 : i32, i32, i32
  }
  func.func @transform_11(%arg0: i32, %arg1: i32) -> (i32, i32, i32) {
    %c0_i32 = arith.constant 0 : i32
    %c0_i32_0 = arith.constant 0 : i32
    %c0_i32_1 = arith.constant 0 : i32
    return %arg1, %c0_i32, %c0_i32_0 : i32, i32, i32
  }
  func.func @transform_12(%arg0: i32, %arg1: i32) -> (i32, i32, i32) {
    %c0_i32 = arith.constant 0 : i32
    %c0_i32_0 = arith.constant 0 : i32
    %c0_i32_1 = arith.constant 0 : i32
    return %arg1, %c0_i32, %c0_i32_0 : i32, i32, i32
  }
  func.func @transform_13(%arg0: i32, %arg1: i32) -> (i32, i32, i32) {
    %c0_i32 = arith.constant 0 : i32
    %c0_i32_0 = arith.constant 0 : i32
    %c0_i32_1 = arith.constant 0 : i32
    return %arg1, %c0_i32, %c0_i32_0 : i32, i32, i32
  }
  func.func @transform_14(%arg0: i32, %arg1: i32) -> (i32, i32, i32) {
    %c0_i32 = arith.constant 0 : i32
    %c0_i32_0 = arith.constant 0 : i32
    %c0_i32_1 = arith.constant 0 : i32
    return %arg1, %c0_i32, %c0_i32_0 : i32, i32, i32
  }
  func.func @transform_15(%arg0: i32, %arg1: i32) -> (i32, i32, i32) {
    %c0_i32 = arith.constant 0 : i32
    %c0_i32_0 = arith.constant 0 : i32
    %c0_i32_1 = arith.constant 0 : i32
    return %arg1, %c0_i32, %c0_i32_0 : i32, i32, i32
  }
  func.func @transform_16(%arg0: i32, %arg1: i32) -> (i32, i32) {
    %c0_i32 = arith.constant 0 : i32
    %c0_i32_0 = arith.constant 0 : i32
    %c0_i32_1 = arith.constant 0 : i32
    return %c0_i32, %c0_i32_0 : i32, i32
  }
  func.func @transform_17(%arg0: i32, %arg1: i32) -> (i32, i32) {
    %c0_i32 = arith.constant 0 : i32
    %c0_i32_0 = arith.constant 0 : i32
    %c0_i32_1 = arith.constant 0 : i32
    return %c0_i32, %c0_i32_0 : i32, i32
  }
  func.func @transform_18(%arg0: i32, %arg1: i32) -> (i32, i32) {
    %c0_i32 = arith.constant 0 : i32
    %c0_i32_0 = arith.constant 0 : i32
    return %arg0, %c0_i32 : i32, i32
  }
  func.func @transform_19(%arg0: i32, %arg1: i32) -> (i32, i32) {
    %c0_i32 = arith.constant 0 : i32
    %c0_i32_0 = arith.constant 0 : i32
    return %arg0, %c0_i32 : i32, i32
  }
}

</mosaic_0001>

<llo_original>
// kernel: tpu_custom_call.1
$region0: #{tpu_custom_call.1}
  #allocation0 [shape = 'u32[]', space=smem, size = 0x4, offset = 0x4, fixed_abs, tag = 'smem constant byte address 0x4 - core index']
  #allocation1 [shape = 'u32[72,128]{1,0:T(1,128)}', space=vmem, size = 0x9000, scoped, tag = 'internal scratch']
  #allocation2 [shape = 'f32[8,128]{1,0:T(8,128)}', space=vmem, size = 0x1000, scoped, tag = 'scratch operand']
  %s0 = inlined_call_operand.vmem [shape: f32[8,1], index: 0, kind: input, shape index: {}]
  %s1 = inlined_call_operand.hbm [shape: f32[1,128], index: 1, kind: input, shape index: {}]
  %s2 = inlined_call_operand.vmem [shape: f32[8,128], index: 2, kind: input, shape index: {}]
  %s3 = inlined_call_operand.hbm [shape: f32[8,128], index: 3, kind: input, shape index: {}]
  %s4 = inlined_call_operand.hbm [shape: f32[256,256], index: 4, kind: input, shape index: {}]
  %s5 = inlined_call_operand.vmem [shape: f32[1,256], index: 5, kind: input, shape index: {}]
  %s6 = inlined_call_operand.hbm [shape: f32[256,256], index: 6, kind: input, shape index: {}]
  %s7 = inlined_call_operand.vmem [shape: f32[1,256], index: 7, kind: input, shape index: {}]
  %s8 = inlined_call_operand.hbm [shape: f32[512,128], index: 8, kind: input, shape index: {}]
  %s9 = inlined_call_operand.hbm [shape: f32[1,128], index: 9, kind: input, shape index: {}]
  %s10 = inlined_call_operand.vmem [shape: f32[2,1,128], index: 10, kind: input, shape index: {}]
  %s11 = inlined_call_operand.vmem [shape: f32[2,1,128], index: 11, kind: input, shape index: {}]
  %s12 = inlined_call_operand.hbm [shape: f32[2,128,128], index: 12, kind: input, shape index: {}]
  %s13 = inlined_call_operand.vmem [shape: f32[2,1,128], index: 13, kind: input, shape index: {}]
  %s14 = inlined_call_operand.hbm [shape: f32[2,128,128], index: 14, kind: input, shape index: {}]
  %s15 = inlined_call_operand.vmem [shape: f32[2,1,128], index: 15, kind: input, shape index: {}]
  %s16 = inlined_call_operand.hbm [shape: f32[128,128], index: 16, kind: input, shape index: {}]
  %s17 = inlined_call_operand.vmem [shape: f32[1,128], index: 17, kind: input, shape index: {}]
  %s18 = inlined_call_operand.hbm [shape: f32[8,128], index: 18, kind: output, shape index: {0}]
  %s19 = inlined_call_operand.hbm [shape: f32[8,128], index: 19, kind: output, shape index: {1}]
  %20 = xla_tuple %s18, %s19
  %s21 = sld [smem:[#allocation0]]
  $region157: #{tpu_custom_call.1} parent=0
    _
  %s23 = ssub.s32 1, %s21
  %s24 = scalar_select 0, %s23, %s21
  $region1: #{tpu_custom_call.1} parent=0
    #allocation3 [shape = 'u8[512]{0}', space=vmem, size = 0x400, scoped, tag = 'input window, operand 1, single buffered']
    #allocation4 [shape = 's32[2]{0}', space=sflag, size = 0x8, scoped, tag = 'scoped memory for tpu_custom_call.1']
    #allocation5 [shape = 's32[2]{0}', space=sflag, size = 0x8, scoped, tag = 'scoped memory for tpu_custom_call.1']
    #allocation6 [shape = 'u8[4096]{0}', space=vmem, size = 0x1000, scoped, tag = 'input window, operand 3, single buffered']
    #allocation7 [shape = 's32[1]{0}', space=sflag, size = 0x4, scoped, tag = 'scoped memory for tpu_custom_call.1']
    #allocation8 [shape = 'u8[262144]{0}', space=vmem, size = 0x40000, scoped, tag = 'input window, operand 4, single buffered']
    #allocation9 [shape = 'u8[262144]{0}', space=vmem, size = 0x40000, scoped, tag = 'input window, operand 6, single buffered']
    #allocation10 [shape = 's32[1]{0}', space=sflag, size = 0x4, scoped, tag = 'scoped memory for tpu_custom_call.1']
    #allocation11 [shape = 'u8[262144]{0}', space=vmem, size = 0x40000, scoped, tag = 'input window, operand 8, single buffered']
    #allocation12 [shape = 'u8[512]{0}', space=vmem, size = 0x400, scoped, tag = 'input window, operand 9, single buffered']
    #allocation13 [shape = 's32[1]{0}', space=sflag, size = 0x4, scoped, tag = 'scoped memory for tpu_custom_call.1']
    #allocation14 [shape = 'u8[131072]{0}', space=vmem, size = 0x20000, scoped, tag = 'input window, operand 12']
    #allocation15 [shape = 'u8[131072]{0}', space=vmem, size = 0x20000, scoped, tag = 'input window, operand 14']
    #allocation16 [shape = 'u8[65536]{0}', space=vmem, size = 0x10000, scoped, tag = 'input window, operand 16, single buffered']
    #allocation17 [shape = 'u8[4096]{0}', space=vmem, size = 0x1000, scoped, tag = 'output window, operand 0, single buffered']
    #allocation18 [shape = 'u8[4096]{0}', space=vmem, size = 0x1000, scoped, tag = 'output window, operand 1, single buffered']
    #allocation19 [shape = 's32[1]{0}', space=sflag, size = 0x4, scoped, tag = 'scoped memory for tpu_custom_call.1']
    %25 = vsyncpa [#allocation4], 0
    %26 = vsyncpa [#allocation7], 0
    %27 = vsyncpa [#allocation10], 0
    %28 = vsyncpa [#allocation13], 0
    %29 = vsyncpa [#allocation5], 0
    %30 = vsyncpa [#allocation19], 0
    loop: start=0, step=1, limit=4
    $region2: #{tpu_custom_call.1} parent=1 // loop_pre_header
      _
    $region3: #{tpu_custom_call.1} parent=1 // loop_header
      %s32 = sphi 0, %s36
      %p33 = scmp.ge.s32.totalorder %s32, 4
      %s39 = sphi 0, %s51
      %s40 = sphi 0, %s47
      %s41 = sphi 0, %s39
      %s42 = sphi 0, %s40
      %s43 = sphi 0, %s41
      %s44 = sphi 0, %s42
      %s54 = sphi 0, %s56
      %s57 = sphi 0, %s54
      %s58 = sphi 0, %s57
      %s74 = sphi 0, %s58
      %s78 = sphi 0, %s78
      %s80 = sphi 0, %s78
      %s81 = sphi 0, %s80
      %s95 = sphi 0, %s81
      %s101 = sphi 0, %s103
      %s104 = sphi 0, %s101
      %s105 = sphi 0, %s104
      %s121 = sphi 0, %s105
      %s127 = sphi 0, %s129
      %s130 = sphi 0, %s127
      %s131 = sphi 0, %s130
      %s147 = sphi 0, %s131
      %s151 = sphi 0, %s151
      %s153 = sphi 0, %s151
      %s154 = sphi 0, %s153
      %s168 = sphi 0, %s154
      %s172 = sphi 0, %s172
      %s174 = sphi 0, %s172
      %s175 = sphi 0, %s174
      %s189 = sphi 0, %s175
      %s193 = sphi 0, %s193
      %s195 = sphi 0, %s193
      %s196 = sphi 0, %s195
      %s210 = sphi 0, %s196
      %s214 = sphi 0, %s214
      %s216 = sphi 0, %s214
      %s217 = sphi 0, %s216
      %s231 = sphi 0, %s217
      %s235 = sphi 0, %s235
      %s237 = sphi 0, %s235
      %s238 = sphi 0, %s237
      %s252 = sphi 0, %s238
      %s256 = sphi 0, %s256
      %s258 = sphi 0, %s256
      %s259 = sphi 0, %s258
      %s273 = sphi 0, %s259
      %s279 = sphi 0, %s281
      %s282 = sphi 0, %s279
      %s283 = sphi 0, %s282
      %s299 = sphi 0, %s283
      %s305 = sphi 0, %s307
      %s308 = sphi 0, %s305
      %s309 = sphi 0, %s308
      %s325 = sphi 0, %s309
      %s331 = sphi 0, %s333
      %s334 = sphi 0, %s331
      %s335 = sphi 0, %s334
      %s351 = sphi 0, %s335
      %s357 = sphi 0, %s359
      %s360 = sphi 0, %s357
      %s361 = sphi 0, %s360
      %s377 = sphi 0, %s361
      %s383 = sphi 0, %s385
      %s386 = sphi 0, %s383
      %s387 = sphi 0, %s386
      %s403 = sphi 0, %s387
      %s409 = sphi 0, %s411
      %s412 = sphi 0, %s409
      %s413 = sphi 0, %s412
      %s429 = sphi 0, %s413
      %s433 = sphi 0, %s433
      %s435 = sphi 0, %s433
      %s436 = sphi 0, %s435
      %s450 = sphi 0, %s436
      %s454 = sphi 0, %s454
      %s456 = sphi 0, %s454
      %s457 = sphi 0, %s456
      %s471 = sphi 0, %s457
      %s477 = sphi 0, %s479
      %s480 = sphi 0, %s477
      %s481 = sphi 0, %s480
      %s497 = sphi 0, %s481
      %s503 = sphi 0, %s505
      %s506 = sphi 0, %s503
      %s507 = sphi 0, %s506
      %s523 = sphi 0, %s507
    $region4: #{tpu_custom_call.1} parent=1 // loop_header_branch
      %35 = sbr.rel (%p33) target = $region8
    $region5: #{tpu_custom_call.1} parent=1 // loop_body
      %s37 = ssub.s32 %s32, 1
      %s38 = ssub.s32 %s32, 2
      %s45 = sadd.s32 1, %s40
      %p46 = scmp.ge.s32.totalorder %s45, 2
      %s47 = scalar_select %p46, 0, %s45
      %s48 = sadd.s32 1, %s39
      %s49 = scalar_select %p46, %s48, %s39
      %p50 = scmp.ge.s32.totalorder %s49, 1
      %s51 = scalar_select %p50, 0, %s49
      %s52 = ssub.s32 %s39, %s51
      %p53 = scmp.eq.s32.totalorder %s52, 0
      %s55 = sadd.s32 %s54, 1
      %s56 = scalar_select %p53, %s54, %s55
      %p59 = pneg %p53
      %p60 = scmp.eq.s32.totalorder %s32, 1
      %p61 = por %p59, %p60
      %p62 = scmp.ne.s32.totalorder %s54, %s57
      %p63 = scmp.eq.s32.totalorder %s32, 0
      %p64 = por %p62, %p63
      %p65 = scmp.ne.s32.totalorder %s54, %s57
      %p66 = scmp.eq.s32.totalorder %s37, 1
      %p67 = por %p65, %p66
      %p68 = scmp.ne.s32.totalorder %s57, %s58
      %p69 = scmp.eq.s32.totalorder %s37, 0
      %p70 = por %p68, %p69
      %p71 = scmp.ne.s32.totalorder %s57, %s58
      %p72 = scmp.eq.s32.totalorder %s38, 1
      %p73 = por %p71, %p72
      %p75 = scmp.ne.s32.totalorder %s58, %s74
      %p76 = scmp.eq.s32.totalorder %s38, 0
      %p77 = por %p75, %p76
      %s79 = sadd.s32 %s78, 1
      %p82 = scmp.eq.s32.totalorder %s32, 1
      %p83 = scmp.ne.s32.totalorder %s78, %s80
      %p84 = scmp.eq.s32.totalorder %s32, 0
      %p85 = por %p83, %p84
      %p86 = scmp.ne.s32.totalorder %s78, %s80
      %p87 = scmp.eq.s32.totalorder %s37, 1
      %p88 = por %p86, %p87
      %p89 = scmp.ne.s32.totalorder %s80, %s81
      %p90 = scmp.eq.s32.totalorder %s37, 0
      %p91 = por %p89, %p90
      %p92 = scmp.ne.s32.totalorder %s80, %s81
      %p93 = scmp.eq.s32.totalorder %s38, 1
      %p94 = por %p92, %p93
      %p96 = scmp.ne.s32.totalorder %s81, %s95
      %p97 = scmp.eq.s32.totalorder %s38, 0
      %p98 = por %p96, %p97
      %s99 = ssub.s32 %s39, %s51
      %p100 = scmp.eq.s32.totalorder %s99, 0
      %s102 = sadd.s32 %s101, 1
      %s103 = scalar_select %p100, %s101, %s102
      %p106 = pneg %p100
      %p107 = scmp.eq.s32.totalorder %s32, 1
      %p108 = por %p106, %p107
      %p109 = scmp.ne.s32.totalorder %s101, %s104
      %p110 = scmp.eq.s32.totalorder %s32, 0
      %p111 = por %p109, %p110
      %p112 = scmp.ne.s32.totalorder %s101, %s104
      %p113 = scmp.eq.s32.totalorder %s37, 1
      %p114 = por %p112, %p113
      %p115 = scmp.ne.s32.totalorder %s104, %s105
      %p116 = scmp.eq.s32.totalorder %s37, 0
      %p117 = por %p115, %p116
      %p118 = scmp.ne.s32.totalorder %s104, %s105
      %p119 = scmp.eq.s32.totalorder %s38, 1
      %p120 = por %p118, %p119
      %p122 = scmp.ne.s32.totalorder %s105, %s121
      %p123 = scmp.eq.s32.totalorder %s38, 0
      %p124 = por %p122, %p123
      %s125 = ssub.s32 %s39, %s51
      %p126 = scmp.eq.s32.totalorder %s125, 0
      %s128 = sadd.s32 %s127, 1
      %s129 = scalar_select %p126, %s127, %s128
      %p132 = pneg %p126
      %p133 = scmp.eq.s32.totalorder %s32, 1
      %p134 = por %p132, %p133
      %p135 = scmp.ne.s32.totalorder %s127, %s130
      %p136 = scmp.eq.s32.totalorder %s32, 0
      %p137 = por %p135, %p136
      %p138 = scmp.ne.s32.totalorder %s127, %s130
      %p139 = scmp.eq.s32.totalorder %s37, 1
      %p140 = por %p138, %p139
      %p141 = scmp.ne.s32.totalorder %s130, %s131
      %p142 = scmp.eq.s32.totalorder %s37, 0
      %p143 = por %p141, %p142
      %p144 = scmp.ne.s32.totalorder %s130, %s131
      %p145 = scmp.eq.s32.totalorder %s38, 1
      %p146 = por %p144, %p145
      %p148 = scmp.ne.s32.totalorder %s131, %s147
      %p149 = scmp.eq.s32.totalorder %s38, 0
      %p150 = por %p148, %p149
      %s152 = sadd.s32 %s151, 1
      %p155 = scmp.eq.s32.totalorder %s32, 1
      %p156 = scmp.ne.s32.totalorder %s151, %s153
      %p157 = scmp.eq.s32.totalorder %s32, 0
      %p158 = por %p156, %p157
      %p159 = scmp.ne.s32.totalorder %s151, %s153
      %p160 = scmp.eq.s32.totalorder %s37, 1
      %p161 = por %p159, %p160
      %p162 = scmp.ne.s32.totalorder %s153, %s154
      %p163 = scmp.eq.s32.totalorder %s37, 0
      %p164 = por %p162, %p163
      %p165 = scmp.ne.s32.totalorder %s153, %s154
      %p166 = scmp.eq.s32.totalorder %s38, 1
      %p167 = por %p165, %p166
      %p169 = scmp.ne.s32.totalorder %s154, %s168
      %p170 = scmp.eq.s32.totalorder %s38, 0
      %p171 = por %p169, %p170
      %s173 = sadd.s32 %s172, 1
      %p176 = scmp.eq.s32.totalorder %s32, 1
      %p177 = scmp.ne.s32.totalorder %s172, %s174
      %p178 = scmp.eq.s32.totalorder %s32, 0
      %p179 = por %p177, %p178
      %p180 = scmp.ne.s32.totalorder %s172, %s174
      %p181 = scmp.eq.s32.totalorder %s37, 1
      %p182 = por %p180, %p181
      %p183 = scmp.ne.s32.totalorder %s174, %s175
      %p184 = scmp.eq.s32.totalorder %s37, 0
      %p185 = por %p183, %p184
      %p186 = scmp.ne.s32.totalorder %s174, %s175
      %p187 = scmp.eq.s32.totalorder %s38, 1
      %p188 = por %p186, %p187
      %p190 = scmp.ne.s32.totalorder %s175, %s189
      %p191 = scmp.eq.s32.totalorder %s38, 0
      %p192 = por %p190, %p191
      %s194 = sadd.s32 %s193, 1
      %p197 = scmp.eq.s32.totalorder %s32, 1
      %p198 = scmp.ne.s32.totalorder %s193, %s195
      %p199 = scmp.eq.s32.totalorder %s32, 0
      %p200 = por %p198, %p199
      %p201 = scmp.ne.s32.totalorder %s193, %s195
      %p202 = scmp.eq.s32.totalorder %s37, 1
      %p203 = por %p201, %p202
      %p204 = scmp.ne.s32.totalorder %s195, %s196
      %p205 = scmp.eq.s32.totalorder %s37, 0
      %p206 = por %p204, %p205
      %p207 = scmp.ne.s32.totalorder %s195, %s196
      %p208 = scmp.eq.s32.totalorder %s38, 1
      %p209 = por %p207, %p208
      %p211 = scmp.ne.s32.totalorder %s196, %s210
      %p212 = scmp.eq.s32.totalorder %s38, 0
      %p213 = por %p211, %p212
      %s215 = sadd.s32 %s214, 1
      %p218 = scmp.eq.s32.totalorder %s32, 1
      %p219 = scmp.ne.s32.totalorder %s214, %s216
      %p220 = scmp.eq.s32.totalorder %s32, 0
      %p221 = por %p219, %p220
      %p222 = scmp.ne.s32.totalorder %s214, %s216
      %p223 = scmp.eq.s32.totalorder %s37, 1
      %p224 = por %p222, %p223
      %p225 = scmp.ne.s32.totalorder %s216, %s217
      %p226 = scmp.eq.s32.totalorder %s37, 0
      %p227 = por %p225, %p226
      %p228 = scmp.ne.s32.totalorder %s216, %s217
      %p229 = scmp.eq.s32.totalorder %s38, 1
      %p230 = por %p228, %p229
      %p232 = scmp.ne.s32.totalorder %s217, %s231
      %p233 = scmp.eq.s32.totalorder %s38, 0
      %p234 = por %p232, %p233
      %s236 = sadd.s32 %s235, 1
      %p239 = scmp.eq.s32.totalorder %s32, 1
      %p240 = scmp.ne.s32.totalorder %s235, %s237
      %p241 = scmp.eq.s32.totalorder %s32, 0
      %p242 = por %p240, %p241
      %p243 = scmp.ne.s32.totalorder %s235, %s237
      %p244 = scmp.eq.s32.totalorder %s37, 1
      %p245 = por %p243, %p244
      %p246 = scmp.ne.s32.totalorder %s237, %s238
      %p247 = scmp.eq.s32.totalorder %s37, 0
      %p248 = por %p246, %p247
      %p249 = scmp.ne.s32.totalorder %s237, %s238
      %p250 = scmp.eq.s32.totalorder %s38, 1
      %p251 = por %p249, %p250
      %p253 = scmp.ne.s32.totalorder %s238, %s252
      %p254 = scmp.eq.s32.totalorder %s38, 0
      %p255 = por %p253, %p254
      %s257 = sadd.s32 %s256, 1
      %p260 = scmp.eq.s32.totalorder %s32, 1
      %p261 = scmp.ne.s32.totalorder %s256, %s258
      %p262 = scmp.eq.s32.totalorder %s32, 0
      %p263 = por %p261, %p262
      %p264 = scmp.ne.s32.totalorder %s256, %s258
      %p265 = scmp.eq.s32.totalorder %s37, 1
      %p266 = por %p264, %p265
      %p267 = scmp.ne.s32.totalorder %s258, %s259
      %p268 = scmp.eq.s32.totalorder %s37, 0
      %p269 = por %p267, %p268
      %p270 = scmp.ne.s32.totalorder %s258, %s259
      %p271 = scmp.eq.s32.totalorder %s38, 1
      %p272 = por %p270, %p271
      %p274 = scmp.ne.s32.totalorder %s259, %s273
      %p275 = scmp.eq.s32.totalorder %s38, 0
      %p276 = por %p274, %p275
      %s277 = ssub.s32 %s40, %s47
      %p278 = scmp.eq.s32.totalorder %s277, 0
      %s280 = sadd.s32 %s279, 1
      %s281 = scalar_select %p278, %s279, %s280
      %p284 = pneg %p278
      %p285 = scmp.eq.s32.totalorder %s32, 1
      %p286 = por %p284, %p285
      %p287 = scmp.ne.s32.totalorder %s279, %s282
      %p288 = scmp.eq.s32.totalorder %s32, 0
      %p289 = por %p287, %p288
      %p290 = scmp.ne.s32.totalorder %s279, %s282
      %p291 = scmp.eq.s32.totalorder %s37, 1
      %p292 = por %p290, %p291
      %p293 = scmp.ne.s32.totalorder %s282, %s283
      %p294 = scmp.eq.s32.totalorder %s37, 0
      %p295 = por %p293, %p294
      %p296 = scmp.ne.s32.totalorder %s282, %s283
      %p297 = scmp.eq.s32.totalorder %s38, 1
      %p298 = por %p296, %p297
      %p300 = scmp.ne.s32.totalorder %s283, %s299
      %p301 = scmp.eq.s32.totalorder %s38, 0
      %p302 = por %p300, %p301
      %s303 = ssub.s32 %s40, %s47
      %p304 = scmp.eq.s32.totalorder %s303, 0
      %s306 = sadd.s32 %s305, 1
      %s307 = scalar_select %p304, %s305, %s306
      %p310 = pneg %p304
      %p311 = scmp.eq.s32.totalorder %s32, 1
      %p312 = por %p310, %p311
      %p313 = scmp.ne.s32.totalorder %s305, %s308
      %p314 = scmp.eq.s32.totalorder %s32, 0
      %p315 = por %p313, %p314
      %p316 = scmp.ne.s32.totalorder %s305, %s308
      %p317 = scmp.eq.s32.totalorder %s37, 1
      %p318 = por %p316, %p317
      %p319 = scmp.ne.s32.totalorder %s308, %s309
      %p320 = scmp.eq.s32.totalorder %s37, 0
      %p321 = por %p319, %p320
      %p322 = scmp.ne.s32.totalorder %s308, %s309
      %p323 = scmp.eq.s32.totalorder %s38, 1
      %p324 = por %p322, %p323
      %p326 = scmp.ne.s32.totalorder %s309, %s325
      %p327 = scmp.eq.s32.totalorder %s38, 0
      %p328 = por %p326, %p327
      %s329 = ssub.s32 %s40, %s47
      %p330 = scmp.eq.s32.totalorder %s329, 0
      %s332 = sadd.s32 %s331, 1
      %s333 = scalar_select %p330, %s331, %s332
      %p336 = pneg %p330
      %p337 = scmp.eq.s32.totalorder %s32, 1
      %p338 = por %p336, %p337
      %p339 = scmp.ne.s32.totalorder %s331, %s334
      %p340 = scmp.eq.s32.totalorder %s32, 0
      %p341 = por %p339, %p340
      %p342 = scmp.ne.s32.totalorder %s331, %s334
      %p343 = scmp.eq.s32.totalorder %s37, 1
      %p344 = por %p342, %p343
      %p345 = scmp.ne.s32.totalorder %s334, %s335
      %p346 = scmp.eq.s32.totalorder %s37, 0
      %p347 = por %p345, %p346
      %p348 = scmp.ne.s32.totalorder %s334, %s335
      %p349 = scmp.eq.s32.totalorder %s38, 1
      %p350 = por %p348, %p349
      %p352 = scmp.ne.s32.totalorder %s335, %s351
      %p353 = scmp.eq.s32.totalorder %s38, 0
      %p354 = por %p352, %p353
      %s355 = ssub.s32 %s40, %s47
      %p356 = scmp.eq.s32.totalorder %s355, 0
      %s358 = sadd.s32 %s357, 1
      %s359 = scalar_select %p356, %s357, %s358
      %p362 = pneg %p356
      %p363 = scmp.eq.s32.totalorder %s32, 1
      %p364 = por %p362, %p363
      %p365 = scmp.ne.s32.totalorder %s357, %s360
      %p366 = scmp.eq.s32.totalorder %s32, 0
      %p367 = por %p365, %p366
      %p368 = scmp.ne.s32.totalorder %s357, %s360
      %p369 = scmp.eq.s32.totalorder %s37, 1
      %p370 = por %p368, %p369
      %p371 = scmp.ne.s32.totalorder %s360, %s361
      %p372 = scmp.eq.s32.totalorder %s37, 0
      %p373 = por %p371, %p372
      %p374 = scmp.ne.s32.totalorder %s360, %s361
      %p375 = scmp.eq.s32.totalorder %s38, 1
      %p376 = por %p374, %p375
      %p378 = scmp.ne.s32.totalorder %s361, %s377
      %p379 = scmp.eq.s32.totalorder %s38, 0
      %p380 = por %p378, %p379
      %s381 = ssub.s32 %s40, %s47
      %p382 = scmp.eq.s32.totalorder %s381, 0
      %s384 = sadd.s32 %s383, 1
      %s385 = scalar_select %p382, %s383, %s384
      %p388 = pneg %p382
      %p389 = scmp.eq.s32.totalorder %s32, 1
      %p390 = por %p388, %p389
      %p391 = scmp.ne.s32.totalorder %s383, %s386
      %p392 = scmp.eq.s32.totalorder %s32, 0
      %p393 = por %p391, %p392
      %p394 = scmp.ne.s32.totalorder %s383, %s386
      %p395 = scmp.eq.s32.totalorder %s37, 1
      %p396 = por %p394, %p395
      %p397 = scmp.ne.s32.totalorder %s386, %s387
      %p398 = scmp.eq.s32.totalorder %s37, 0
      %p399 = por %p397, %p398
      %p400 = scmp.ne.s32.totalorder %s386, %s387
      %p401 = scmp.eq.s32.totalorder %s38, 1
      %p402 = por %p400, %p401
      %p404 = scmp.ne.s32.totalorder %s387, %s403
      %p405 = scmp.eq.s32.totalorder %s38, 0
      %p406 = por %p404, %p405
      %s407 = ssub.s32 %s40, %s47
      %p408 = scmp.eq.s32.totalorder %s407, 0
      %s410 = sadd.s32 %s409, 1
      %s411 = scalar_select %p408, %s409, %s410
      %p414 = pneg %p408
      %p415 = scmp.eq.s32.totalorder %s32, 1
      %p416 = por %p414, %p415
      %p417 = scmp.ne.s32.totalorder %s409, %s412
      %p418 = scmp.eq.s32.totalorder %s32, 0
      %p419 = por %p417, %p418
      %p420 = scmp.ne.s32.totalorder %s409, %s412
      %p421 = scmp.eq.s32.totalorder %s37, 1
      %p422 = por %p420, %p421
      %p423 = scmp.ne.s32.totalorder %s412, %s413
      %p424 = scmp.eq.s32.totalorder %s37, 0
      %p425 = por %p423, %p424
      %p426 = scmp.ne.s32.totalorder %s412, %s413
      %p427 = scmp.eq.s32.totalorder %s38, 1
      %p428 = por %p426, %p427
      %p430 = scmp.ne.s32.totalorder %s413, %s429
      %p431 = scmp.eq.s32.totalorder %s38, 0
      %p432 = por %p430, %p431
      %s434 = sadd.s32 %s433, 1
      %p437 = scmp.eq.s32.totalorder %s32, 1
      %p438 = scmp.ne.s32.totalorder %s433, %s435
      %p439 = scmp.eq.s32.totalorder %s32, 0
      %p440 = por %p438, %p439
      %p441 = scmp.ne.s32.totalorder %s433, %s435
      %p442 = scmp.eq.s32.totalorder %s37, 1
      %p443 = por %p441, %p442
      %p444 = scmp.ne.s32.totalorder %s435, %s436
      %p445 = scmp.eq.s32.totalorder %s37, 0
      %p446 = por %p444, %p445
      %p447 = scmp.ne.s32.totalorder %s435, %s436
      %p448 = scmp.eq.s32.totalorder %s38, 1
      %p449 = por %p447, %p448
      %p451 = scmp.ne.s32.totalorder %s436, %s450
      %p452 = scmp.eq.s32.totalorder %s38, 0
      %p453 = por %p451, %p452
      %s455 = sadd.s32 %s454, 1
      %p458 = scmp.eq.s32.totalorder %s32, 1
      %p459 = scmp.ne.s32.totalorder %s454, %s456
      %p460 = scmp.eq.s32.totalorder %s32, 0
      %p461 = por %p459, %p460
      %p462 = scmp.ne.s32.totalorder %s454, %s456
      %p463 = scmp.eq.s32.totalorder %s37, 1
      %p464 = por %p462, %p463
      %p465 = scmp.ne.s32.totalorder %s456, %s457
      %p466 = scmp.eq.s32.totalorder %s37, 0
      %p467 = por %p465, %p466
      %p468 = scmp.ne.s32.totalorder %s456, %s457
      %p469 = scmp.eq.s32.totalorder %s38, 1
      %p470 = por %p468, %p469
      %p472 = scmp.ne.s32.totalorder %s457, %s471
      %p473 = scmp.eq.s32.totalorder %s38, 0
      %p474 = por %p472, %p473
      %s475 = ssub.s32 %s39, %s51
      %p476 = scmp.eq.s32.totalorder %s475, 0
      %s478 = sadd.s32 %s477, 1
      %s479 = scalar_select %p476, %s477, %s478
      %p482 = pneg %p476
      %p483 = scmp.eq.s32.totalorder %s32, 1
      %p484 = por %p482, %p483
      %p485 = scmp.ne.s32.totalorder %s477, %s480
      %p486 = scmp.eq.s32.totalorder %s32, 0
      %p487 = por %p485, %p486
      %p488 = scmp.ne.s32.totalorder %s477, %s480
      %p489 = scmp.eq.s32.totalorder %s37, 1
      %p490 = por %p488, %p489
      %p491 = scmp.ne.s32.totalorder %s480, %s481
      %p492 = scmp.eq.s32.totalorder %s37, 0
      %p493 = por %p491, %p492
      %p494 = scmp.ne.s32.totalorder %s480, %s481
      %p495 = scmp.eq.s32.totalorder %s38, 1
      %p496 = por %p494, %p495
      %p498 = scmp.ne.s32.totalorder %s481, %s497
      %p499 = scmp.eq.s32.totalorder %s38, 0
      %p500 = por %p498, %p499
      %s501 = ssub.s32 %s39, %s51
      %p502 = scmp.eq.s32.totalorder %s501, 0
      %s504 = sadd.s32 %s503, 1
      %s505 = scalar_select %p502, %s503, %s504
      %p508 = pneg %p502
      %p509 = scmp.eq.s32.totalorder %s32, 1
      %p510 = por %p508, %p509
      %p511 = scmp.ne.s32.totalorder %s503, %s506
      %p512 = scmp.eq.s32.totalorder %s32, 0
      %p513 = por %p511, %p512
      %p514 = scmp.ne.s32.totalorder %s503, %s506
      %p515 = scmp.eq.s32.totalorder %s37, 1
      %p516 = por %p514, %p515
      %p517 = scmp.ne.s32.totalorder %s506, %s507
      %p518 = scmp.eq.s32.totalorder %s37, 0
      %p519 = por %p517, %p518
      %p520 = scmp.ne.s32.totalorder %s506, %s507
      %p521 = scmp.eq.s32.totalorder %s38, 1
      %p522 = por %p520, %p521
      %p524 = scmp.ne.s32.totalorder %s507, %s523
      %p525 = scmp.eq.s32.totalorder %s38, 0
      %p526 = por %p524, %p525
      %p527 = scmp.le.s32.totalorder 1, %s32
      %p528 = scmp.lt.s32.totalorder %s32, 3
      %p529 = pnand %p527, %p528
      %p530 = pneg %p529
      // Predicated region
      $region9: #{tpu_custom_call.1} parent=5 // pred_check
        _
      $region10: #{tpu_custom_call.1} parent=5 // pred_check_branch
        %532 = sbr.rel (%p529) target = $region12
      $region11: #{tpu_custom_call.1} parent=5 // pred_region
        %s533 = ssub.s32 %s32, 1
        // Predicated region
        $region13: #{tpu_custom_call.1} parent=11 // pred_check
          %p534 = pneg %p70
        $region14: #{tpu_custom_call.1} parent=11 // pred_check_branch
          %536 = sbr.rel (%p534) target = $region16
        $region15: #{tpu_custom_call.1} parent=11 // pred_region
          %p537 = scmp.lt.s32.totalorder %s41, 0
          %s538 = scalar_select %p537, %s41, 0
          %s539 = smul.addr %s538, 8
          %s540 = scalar_lea.vmem %s0, %s539
        $region16: #{tpu_custom_call.1} parent=11 // pred_fallthru
          _
        // Predicated region
        $region17: #{tpu_custom_call.1} parent=11 // pred_check
          %p541 = pneg %p91
        $region18: #{tpu_custom_call.1} parent=11 // pred_check_branch
          %543 = sbr.rel (%p541) target = $region20
        $region19: #{tpu_custom_call.1} parent=11 // pred_region
          %545 = vsyncadd [#allocation4], 0
          %s547 = sshll.u32 %s1, 4
          %s548 = int_to_ptr.hbm [resolvable:$true] %s547
          %s549 = sshll.u32 [#allocation3], 4
          %s550 = int_to_ptr.vmem [resolvable:$true] %s549
          %552 = dma.hbm_to_vmem [thread:$0]  %s548, 16, %s550, [#allocation4]
        $region20: #{tpu_custom_call.1} parent=11 // pred_fallthru
          _
        // Predicated region
        $region21: #{tpu_custom_call.1} parent=11 // pred_check
          %p553 = pneg %p117
        $region22: #{tpu_custom_call.1} parent=11 // pred_check_branch
          %555 = sbr.rel (%p553) target = $region24
        $region23: #{tpu_custom_call.1} parent=11 // pred_region
          %p556 = scmp.lt.s32.totalorder %s41, 0
          %s557 = scalar_select %p556, %s41, 0
          %s558 = smul.addr %s557, 8
          %s559 = scalar_lea.vmem %s2, %s558
        $region24: #{tpu_custom_call.1} parent=11 // pred_fallthru
          _
        // Predicated region
        $region25: #{tpu_custom_call.1} parent=11 // pred_check
          %p560 = pneg %p143
        $region26: #{tpu_custom_call.1} parent=11 // pred_check_branch
          %562 = sbr.rel (%p560) target = $region28
        $region27: #{tpu_custom_call.1} parent=11 // pred_region
          %564 = vsyncadd [#allocation7], 0
          %s565 = smul.addr %s41, 8
          %s566 = scalar_lea.hbm %s3, %s565
          %s568 = sshll.u32 %s566, 4
          %s569 = int_to_ptr.hbm [resolvable:$true] %s568
          %s570 = sshll.u32 [#allocation6], 4
          %s571 = int_to_ptr.vmem [resolvable:$true] %s570
          %573 = dma.hbm_to_vmem [thread:$0]  %s569, 128, %s571, [#allocation7]
        $region28: #{tpu_custom_call.1} parent=11 // pred_fallthru
          _
        // Predicated region
        $region29: #{tpu_custom_call.1} parent=11 // pred_check
          %p574 = pneg %p164
        $region30: #{tpu_custom_call.1} parent=11 // pred_check_branch
          %576 = sbr.rel (%p574) target = $region32
        $region31: #{tpu_custom_call.1} parent=11 // pred_region
          %578 = vsyncadd [#allocation7], 0
          %s579 = sshll.u32 %s4, 4
          %s580 = int_to_ptr.hbm [resolvable:$true] %s579
          %s581 = sshll.u32 [#allocation8], 4
          %s582 = int_to_ptr.vmem [resolvable:$true] %s581
          %587 = dma.hbm_to_vmem [thread:$0]  %s580, 8192, %s582, [#allocation7], 256, 256, 16
        $region32: #{tpu_custom_call.1} parent=11 // pred_fallthru
          _
        // Predicated region
        $region33: #{tpu_custom_call.1} parent=11 // pred_check
          %p588 = pneg %p185
        $region34: #{tpu_custom_call.1} parent=11 // pred_check_branch
          %590 = sbr.rel (%p588) target = $region36
        $region35: #{tpu_custom_call.1} parent=11 // pred_region
          _
        $region36: #{tpu_custom_call.1} parent=11 // pred_fallthru
          _
        // Predicated region
        $region37: #{tpu_custom_call.1} parent=11 // pred_check
          %p591 = pneg %p206
        $region38: #{tpu_custom_call.1} parent=11 // pred_check_branch
          %593 = sbr.rel (%p591) target = $region40
        $region39: #{tpu_custom_call.1} parent=11 // pred_region
          %595 = vsyncadd [#allocation10], 0
          %s596 = sshll.u32 %s6, 4
          %s597 = int_to_ptr.hbm [resolvable:$true] %s596
          %s598 = sshll.u32 [#allocation9], 4
          %s599 = int_to_ptr.vmem [resolvable:$true] %s598
          %604 = dma.hbm_to_vmem [thread:$0]  %s597, 8192, %s599, [#allocation10], 256, 256, 16
        $region40: #{tpu_custom_call.1} parent=11 // pred_fallthru
          _
        // Predicated region
        $region41: #{tpu_custom_call.1} parent=11 // pred_check
          %p605 = pneg %p227
        $region42: #{tpu_custom_call.1} parent=11 // pred_check_branch
          %607 = sbr.rel (%p605) target = $region44
        $region43: #{tpu_custom_call.1} parent=11 // pred_region
          _
        $region44: #{tpu_custom_call.1} parent=11 // pred_fallthru
          _
        // Predicated region
        $region45: #{tpu_custom_call.1} parent=11 // pred_check
          %p608 = pneg %p248
        $region46: #{tpu_custom_call.1} parent=11 // pred_check_branch
          %610 = sbr.rel (%p608) target = $region48
        $region47: #{tpu_custom_call.1} parent=11 // pred_region
          %612 = vsyncadd [#allocation10], 0
          %s613 = sshll.u32 %s8, 4
          %s614 = int_to_ptr.hbm [resolvable:$true] %s613
          %s615 = sshll.u32 [#allocation11], 4
          %s616 = int_to_ptr.vmem [resolvable:$true] %s615
          %621 = dma.hbm_to_vmem [thread:$0]  %s614, 8192, %s616, [#allocation10], 128, 128, 8
        $region48: #{tpu_custom_call.1} parent=11 // pred_fallthru
          _
        // Predicated region
        $region49: #{tpu_custom_call.1} parent=11 // pred_check
          %p622 = pneg %p269
        $region50: #{tpu_custom_call.1} parent=11 // pred_check_branch
          %624 = sbr.rel (%p622) target = $region52
        $region51: #{tpu_custom_call.1} parent=11 // pred_region
          %626 = vsyncadd [#allocation13], 0
          %s628 = sshll.u32 %s9, 4
          %s629 = int_to_ptr.hbm [resolvable:$true] %s628
          %s630 = sshll.u32 [#allocation12], 4
          %s631 = int_to_ptr.vmem [resolvable:$true] %s630
          %633 = dma.hbm_to_vmem [thread:$0]  %s629, 16, %s631, [#allocation13]
        $region52: #{tpu_custom_call.1} parent=11 // pred_fallthru
          _
        // Predicated region
        $region53: #{tpu_custom_call.1} parent=11 // pred_check
          %p634 = pneg %p446
        $region54: #{tpu_custom_call.1} parent=11 // pred_check_branch
          %636 = sbr.rel (%p634) target = $region56
        $region55: #{tpu_custom_call.1} parent=11 // pred_region
          %638 = vsyncadd [#allocation7], 0
          %s639 = sshll.u32 %s16, 4
          %s640 = int_to_ptr.hbm [resolvable:$true] %s639
          %s641 = sshll.u32 [#allocation16], 4
          %s642 = int_to_ptr.vmem [resolvable:$true] %s641
          %647 = dma.hbm_to_vmem [thread:$0]  %s640, 2048, %s642, [#allocation7], 128, 128, 8
        $region56: #{tpu_custom_call.1} parent=11 // pred_fallthru
          _
        // Predicated region
        $region57: #{tpu_custom_call.1} parent=11 // pred_check
          %p648 = pneg %p467
        $region58: #{tpu_custom_call.1} parent=11 // pred_check_branch
          %650 = sbr.rel (%p648) target = $region60
        $region59: #{tpu_custom_call.1} parent=11 // pred_region
          _
        $region60: #{tpu_custom_call.1} parent=11 // pred_fallthru
          _
      $region12: #{tpu_custom_call.1} parent=5 // pred_fallthru
        _
      %p651 = scmp.lt.s32.totalorder %s32, 2
      // Predicated region
      $region61: #{tpu_custom_call.1} parent=5 // pred_check
        %p652 = pneg %p651
      $region62: #{tpu_custom_call.1} parent=5 // pred_check_branch
        %654 = sbr.rel (%p652) target = $region64
      $region63: #{tpu_custom_call.1} parent=5 // pred_region
        // Predicated region
        $region65: #{tpu_custom_call.1} parent=63 // pred_check
          %p655 = pneg %p289
        $region66: #{tpu_custom_call.1} parent=63 // pred_check_branch
          %657 = sbr.rel (%p655) target = $region68
        $region67: #{tpu_custom_call.1} parent=63 // pred_region
          %p658 = scmp.lt.s32.totalorder %s40, 1
          %s659 = scalar_select %p658, %s40, 1
          %s660 = scalar_lea.vmem %s10, %s659
        $region68: #{tpu_custom_call.1} parent=63 // pred_fallthru
          _
        // Predicated region
        $region69: #{tpu_custom_call.1} parent=63 // pred_check
          %p661 = pneg %p315
        $region70: #{tpu_custom_call.1} parent=63 // pred_check_branch
          %663 = sbr.rel (%p661) target = $region72
        $region71: #{tpu_custom_call.1} parent=63 // pred_region
          %p664 = scmp.lt.s32.totalorder %s40, 1
          %s665 = scalar_select %p664, %s40, 1
          %s666 = scalar_lea.vmem %s11, %s665
        $region72: #{tpu_custom_call.1} parent=63 // pred_fallthru
          _
        // Predicated region
        $region73: #{tpu_custom_call.1} parent=63 // pred_check
          %p667 = pneg %p341
        $region74: #{tpu_custom_call.1} parent=63 // pred_check_branch
          %669 = sbr.rel (%p667) target = $region76
        $region75: #{tpu_custom_call.1} parent=63 // pred_region
          %s670 = sand.u32 %s32, 1
          %s671 = scalar_lea.sflag [#allocation4], %s670
          %s672 = sand.u32 %s331, 1
          %s673 = smul.addr %s672, 128
          %s674 = scalar_lea.vmem [#allocation14], %s673
          %676 = vsyncadd %s671, 0
          %s677 = smul.addr %s40, 16
          %s678 = smul.addr %s677, 8
          %s679 = scalar_lea.hbm %s12, %s678
          %s680 = sshll.u32 %s679, 4
          %s681 = int_to_ptr.hbm [resolvable:$true] %s680
          %s682 = sshll.u32 %s674, 4
          %s683 = int_to_ptr.vmem [resolvable:$true] %s682
          %688 = dma.hbm_to_vmem [thread:$0]  %s681, 2048, %s683, %s671, 128, 128, 8
        $region76: #{tpu_custom_call.1} parent=63 // pred_fallthru
          _
        // Predicated region
        $region77: #{tpu_custom_call.1} parent=63 // pred_check
          %p689 = pneg %p367
        $region78: #{tpu_custom_call.1} parent=63 // pred_check_branch
          %691 = sbr.rel (%p689) target = $region80
        $region79: #{tpu_custom_call.1} parent=63 // pred_region
          %p692 = scmp.lt.s32.totalorder %s40, 1
          %s693 = scalar_select %p692, %s40, 1
          %s694 = scalar_lea.vmem %s13, %s693
        $region80: #{tpu_custom_call.1} parent=63 // pred_fallthru
          _
        // Predicated region
        $region81: #{tpu_custom_call.1} parent=63 // pred_check
          %p695 = pneg %p393
        $region82: #{tpu_custom_call.1} parent=63 // pred_check_branch
          %697 = sbr.rel (%p695) target = $region84
        $region83: #{tpu_custom_call.1} parent=63 // pred_region
          %s698 = sand.u32 %s32, 1
          %s699 = scalar_lea.sflag [#allocation4], %s698
          %s700 = sand.u32 %s383, 1
          %s701 = smul.addr %s700, 128
          %s702 = scalar_lea.vmem [#allocation15], %s701
          %704 = vsyncadd %s699, 0
          %s705 = smul.addr %s40, 16
          %s706 = smul.addr %s705, 8
          %s707 = scalar_lea.hbm %s14, %s706
          %s708 = sshll.u32 %s707, 4
          %s709 = int_to_ptr.hbm [resolvable:$true] %s708
          %s710 = sshll.u32 %s702, 4
          %s711 = int_to_ptr.vmem [resolvable:$true] %s710
          %716 = dma.hbm_to_vmem [thread:$0]  %s709, 2048, %s711, %s699, 128, 128, 8
        $region84: #{tpu_custom_call.1} parent=63 // pred_fallthru
          _
        // Predicated region
        $region85: #{tpu_custom_call.1} parent=63 // pred_check
          %p717 = pneg %p419
        $region86: #{tpu_custom_call.1} parent=63 // pred_check_branch
          %719 = sbr.rel (%p717) target = $region88
        $region87: #{tpu_custom_call.1} parent=63 // pred_region
          %p720 = scmp.lt.s32.totalorder %s40, 1
          %s721 = scalar_select %p720, %s40, 1
          %s722 = scalar_lea.vmem %s15, %s721
        $region88: #{tpu_custom_call.1} parent=63 // pred_fallthru
          _
      $region64: #{tpu_custom_call.1} parent=5 // pred_fallthru
        _
      %p723 = scmp.le.s32.totalorder 1, %s32
      %p724 = scmp.lt.s32.totalorder %s32, 3
      %p725 = pnand %p723, %p724
      %p726 = pneg %p725
      // Predicated region
      $region89: #{tpu_custom_call.1} parent=5 // pred_check
        _
      $region90: #{tpu_custom_call.1} parent=5 // pred_check_branch
        %728 = sbr.rel (%p725) target = $region92
      $region91: #{tpu_custom_call.1} parent=5 // pred_region
        %s729 = ssub.s32 %s32, 1
        // Predicated region
        $region93: #{tpu_custom_call.1} parent=91 // pred_check
          %p730 = pneg %p91
        $region94: #{tpu_custom_call.1} parent=91 // pred_check_branch
          %732 = sbr.rel (%p730) target = $region96
        $region95: #{tpu_custom_call.1} parent=91 // pred_region
          %734 = dma.done [#allocation4], 16
        $region96: #{tpu_custom_call.1} parent=91 // pred_fallthru
          _
        // Predicated region
        $region97: #{tpu_custom_call.1} parent=91 // pred_check
          %p735 = pneg %p143
        $region98: #{tpu_custom_call.1} parent=91 // pred_check_branch
          %737 = sbr.rel (%p735) target = $region100
        $region99: #{tpu_custom_call.1} parent=91 // pred_region
          %739 = dma.done [#allocation7], 128
        $region100: #{tpu_custom_call.1} parent=91 // pred_fallthru
          _
        // Predicated region
        $region101: #{tpu_custom_call.1} parent=91 // pred_check
          %p740 = pneg %p164
        $region102: #{tpu_custom_call.1} parent=91 // pred_check_branch
          %742 = sbr.rel (%p740) target = $region104
        $region103: #{tpu_custom_call.1} parent=91 // pred_region
          %744 = dma.done [#allocation7], 8192
        $region104: #{tpu_custom_call.1} parent=91 // pred_fallthru
          _
        // Predicated region
        $region105: #{tpu_custom_call.1} parent=91 // pred_check
          %p745 = pneg %p206
        $region106: #{tpu_custom_call.1} parent=91 // pred_check_branch
          %747 = sbr.rel (%p745) target = $region108
        $region107: #{tpu_custom_call.1} parent=91 // pred_region
          %749 = dma.done [#allocation10], 8192
        $region108: #{tpu_custom_call.1} parent=91 // pred_fallthru
          _
        // Predicated region
        $region109: #{tpu_custom_call.1} parent=91 // pred_check
          %p750 = pneg %p248
        $region110: #{tpu_custom_call.1} parent=91 // pred_check_branch
          %752 = sbr.rel (%p750) target = $region112
        $region111: #{tpu_custom_call.1} parent=91 // pred_region
          %754 = dma.done [#allocation10], 8192
        $region112: #{tpu_custom_call.1} parent=91 // pred_fallthru
          _
        // Predicated region
        $region113: #{tpu_custom_call.1} parent=91 // pred_check
          %p755 = pneg %p269
        $region114: #{tpu_custom_call.1} parent=91 // pred_check_branch
          %757 = sbr.rel (%p755) target = $region116
        $region115: #{tpu_custom_call.1} parent=91 // pred_region
          %759 = dma.done [#allocation13], 16
        $region116: #{tpu_custom_call.1} parent=91 // pred_fallthru
          _
        %s760 = sand.u32 %s37, 1
        %s761 = scalar_lea.sflag [#allocation4], %s760
        %s762 = sand.u32 %s334, 1
        %s763 = smul.addr %s762, 128
        %s764 = scalar_lea.vmem [#allocation14], %s763
        // Predicated region
        $region117: #{tpu_custom_call.1} parent=91 // pred_check
          %p765 = pneg %p347
        $region118: #{tpu_custom_call.1} parent=91 // pred_check_branch
          %767 = sbr.rel (%p765) target = $region120
        $region119: #{tpu_custom_call.1} parent=91 // pred_region
          %769 = dma.done %s761, 2048
        $region120: #{tpu_custom_call.1} parent=91 // pred_fallthru
          _
        %s770 = sand.u32 %s37, 1
        %s771 = scalar_lea.sflag [#allocation4], %s770
        %s772 = sand.u32 %s386, 1
        %s773 = smul.addr %s772, 128
        %s774 = scalar_lea.vmem [#allocation15], %s773
        // Predicated region
        $region121: #{tpu_custom_call.1} parent=91 // pred_check
          %p775 = pneg %p399
        $region122: #{tpu_custom_call.1} parent=91 // pred_check_branch
          %777 = sbr.rel (%p775) target = $region124
        $region123: #{tpu_custom_call.1} parent=91 // pred_region
          %779 = dma.done %s771, 2048
        $region124: #{tpu_custom_call.1} parent=91 // pred_fallthru
          _
        // Predicated region
        $region125: #{tpu_custom_call.1} parent=91 // pred_check
          %p780 = pneg %p446
        $region126: #{tpu_custom_call.1} parent=91 // pred_check_branch
          %782 = sbr.rel (%p780) target = $region128
        $region127: #{tpu_custom_call.1} parent=91 // pred_region
          %784 = dma.done [#allocation7], 2048
        $region128: #{tpu_custom_call.1} parent=91 // pred_fallthru
          _
        %p785 = scmp.lt.s32.totalorder %s41, 0
        %s786 = scalar_select %p785, %s41, 0
        %s787 = smul.addr %s786, 8
        %s788 = scalar_lea.vmem %s0, %s787
        %p789 = pneg %p70
        %p790 = pneg %p67
        %p791 = pneg %p91
        %p792 = pneg %p88
        %p793 = scmp.lt.s32.totalorder %s41, 0
        %s794 = scalar_select %p793, %s41, 0
        %s795 = smul.addr %s794, 8
        %s796 = scalar_lea.vmem %s2, %s795
        %p797 = pneg %p117
        %p798 = pneg %p114
        %p799 = pneg %p143
        %p800 = pneg %p140
        %p801 = pneg %p164
        %p802 = pneg %p161
        %p803 = pneg %p185
        %p804 = pneg %p182
        %p805 = pneg %p206
        %p806 = pneg %p203
        %p807 = pneg %p227
        %p808 = pneg %p224
        %p809 = pneg %p248
        %p810 = pneg %p245
        %p811 = pneg %p269
        %p812 = pneg %p266
        %p813 = scmp.lt.s32.totalorder %s42, 1
        %s814 = scalar_select %p813, %s42, 1
        %s815 = scalar_lea.vmem %s10, %s814
        %p816 = pneg %p295
        %p817 = pneg %p292
        %p818 = scmp.lt.s32.totalorder %s42, 1
        %s819 = scalar_select %p818, %s42, 1
        %s820 = scalar_lea.vmem %s11, %s819
        %p821 = pneg %p321
        %p822 = pneg %p318
        %s823 = sand.u32 %s37, 1
        %s824 = scalar_lea.sflag [#allocation4], %s823
        %s825 = sand.u32 %s334, 1
        %s826 = smul.addr %s825, 128
        %s827 = scalar_lea.vmem [#allocation14], %s826
        %p828 = pneg %p347
        %p829 = pneg %p344
        %p830 = scmp.lt.s32.totalorder %s42, 1
        %s831 = scalar_select %p830, %s42, 1
        %s832 = scalar_lea.vmem %s13, %s831
        %p833 = pneg %p373
        %p834 = pneg %p370
        %s835 = sand.u32 %s37, 1
        %s836 = scalar_lea.sflag [#allocation4], %s835
        %s837 = sand.u32 %s386, 1
        %s838 = smul.addr %s837, 128
        %s839 = scalar_lea.vmem [#allocation15], %s838
        %p840 = pneg %p399
        %p841 = pneg %p396
        %p842 = scmp.lt.s32.totalorder %s42, 1
        %s843 = scalar_select %p842, %s42, 1
        %s844 = scalar_lea.vmem %s15, %s843
        %p845 = pneg %p425
        %p846 = pneg %p422
        %p847 = pneg %p446
        %p848 = pneg %p443
        %p849 = pneg %p467
        %p850 = pneg %p464
        %p851 = pneg %p493
        %p852 = pneg %p490
        %p853 = pneg %p519
        %p854 = pneg %p516
        %p855 = scmp.lt.s32.totalorder %s41, 0
        %s856 = scalar_select %p855, %s41, 0
        %s857 = smul.addr %s856, 8
        %s858 = scalar_lea.vmem %s0, %s857
        %p859 = scmp.lt.s32.totalorder %s41, 0
        %s860 = scalar_select %p859, %s41, 0
        %s861 = smul.addr %s860, 8
        %s862 = scalar_lea.vmem %s2, %s861
        %p863 = scmp.lt.s32.totalorder %s42, 1
        %s864 = scalar_select %p863, %s42, 1
        %s865 = scalar_lea.vmem %s10, %s864
        %p866 = scmp.lt.s32.totalorder %s42, 1
        %s867 = scalar_select %p866, %s42, 1
        %s868 = scalar_lea.vmem %s11, %s867
        %p869 = scmp.lt.s32.totalorder %s42, 1
        %s870 = scalar_select %p869, %s42, 1
        %s871 = scalar_lea.vmem %s13, %s870
        %p872 = scmp.lt.s32.totalorder %s42, 1
        %s873 = scalar_select %p872, %s42, 1
        %s874 = scalar_lea.vmem %s15, %s873
        %p875 = scmp.eq.s32.totalorder %s42, 0
        // Predicated region
        $region129: #{tpu_custom_call.1} parent=91 // pred_check
          %p876 = pneg %p875
        $region130: #{tpu_custom_call.1} parent=91 // pred_check_branch
          %878 = sbr.rel (%p876) target = $region132
        $region131: #{tpu_custom_call.1} parent=91 // pred_region
          %v879 = vld [vmem:[%s858] sm:$0xff]
          %v880 = vld [vmem:[#allocation3] sm:$0x1]
          %882 = vset.pattern.permute.xlu0 0
          %883 = vperm.xlu0 %882, %v879
          %v884 = vpop.permute.xlu0 %883
          %v887 = vperm.slane %v880, 0
          %v889 = vmul.f32 %v884, %v887
          %v890 = vand.u32 2147483647, %v889
          %vm891 = vcmp.le.f32.partialorder %v890, 0.7853982
          %vm892 = vcmp.lt.s32.totalorder %v889, 0
          %v893 = vand.u32 %v889, 2139095040
          %v894 = vshrl.u32 %v893, 23
          %v895 = vsub.s32 %v894, 127
          %v896 = vand.u32 2147483647, %v889
          %v897 = vand.u32 %v896, 8388607
          %v898 = vor.u32 %v897, 8388608
          %v899 = vsub.s32 0, %v898
          %v900 = vadd.s32 %v895, 1
          %vm901 = vcmp.gt.s32.totalorder %v900, 0
          %v902 = vsel %vm901, %v900, 0
          %v903 = vshrl.u32 %v902, 5
          %v904 = vand.u32 %v902, 31
          %v905 = vsub.s32 32, %v904
          %v906 = vshrl.u32 683565275, %v905
          %v907 = vshll.u32 683565275, %v904
          %v908 = vshrl.u32 2475754826, %v905
          %v909 = vor.u32 %v907, %v908
          %v910 = vshll.u32 2475754826, %v904
          %v911 = vshrl.u32 2131351028, %v905
          %v912 = vor.u32 %v910, %v911
          %v913 = vshll.u32 2131351028, %v904
          %v914 = vshrl.u32 2102212464, %v905
          %v915 = vor.u32 %v913, %v914
          %v916 = vshll.u32 2102212464, %v904
          %v917 = vshrl.u32 920167782, %v905
          %v918 = vor.u32 %v916, %v917
          %v919 = vshll.u32 920167782, %v904
          %v920 = vshrl.u32 1326507024, %v905
          %v921 = vor.u32 %v919, %v920
          %vm922 = vcmp.lt.s32.totalorder %v903, 1
          %vm923 = vcmp.lt.s32.totalorder %v903, 2
          %vm924 = vcmp.lt.s32.totalorder %v903, 3
          %vm925 = vcmp.lt.s32.totalorder %v903, 4
          %v926 = vsel %vm922, %v906, %v909
          %v927 = vsel %vm925, %v915, 2102212464
          %v928 = vsel %vm924, %v912, %v927
          %v929 = vsel %vm923, %v926, %v928
          %v930 = vsel %vm922, %v909, %v912
          %v931 = vsel %vm925, %v918, 920167782
          %v932 = vsel %vm924, %v915, %v931
          %v933 = vsel %vm923, %v930, %v932
          %v934 = vsel %vm922, %v912, %v915
          %v935 = vsel %vm925, %v921, 1326507024
          %v936 = vsel %vm924, %v918, %v935
          %v937 = vsel %vm923, %v934, %v936
          %v938 = vshll.u32 %v898, 8
          %v939 = vand.u32 %v938, 65535
          %v940 = vshrl.u32 %v938, 16
          %v941 = vand.u32 %v937, 65535
          %v942 = vshrl.u32 %v937, 16
          %v943 = vmul.u32 %v939, %v941
          %v944 = vmul.u32 %v939, %v942
          %v945 = vmul.u32 %v940, %v941
          %v946 = vmul.u32 %v940, %v942
          %v947 = vshll.u32 %v944, 16
          %v948 = vshrl.u32 %v944, 16
          %v949 = vshll.u32 %v945, 16
          %v950 = vshrl.u32 %v945, 16
          %vm951 = vc.u32 %v943, %v947
          %v952 = vsel %vm951, 1, 0
          %v953 = vadd.s32 %v943, %v947
          %v954 = vadd.s32 %v946, %v952
          %vm955 = vc.u32 %v953, %v949
          %v956 = vsel %vm955, 1, 0
          %v957 = vadd.s32 %v953, %v949
          %v958 = vadd.s32 %v954, %v956
          %v959 = vadd.s32 %v958, %v948
          %v960 = vadd.s32 %v959, %v950
          %v961 = vand.u32 %v938, 65535
          %v962 = vshrl.u32 %v938, 16
          %v963 = vand.u32 %v933, 65535
          %v964 = vshrl.u32 %v933, 16
          %v965 = vmul.u32 %v961, %v963
          %v966 = vmul.u32 %v961, %v964
          %v967 = vmul.u32 %v962, %v963
          %v968 = vmul.u32 %v962, %v964
          %v969 = vshll.u32 %v966, 16
          %v970 = vshrl.u32 %v966, 16
          %v971 = vshll.u32 %v967, 16
          %v972 = vshrl.u32 %v967, 16
          %vm973 = vc.u32 %v965, %v969
          %v974 = vsel %vm973, 1, 0
          %v975 = vadd.s32 %v965, %v969
          %v976 = vadd.s32 %v968, %v974
          %vm977 = vc.u32 %v975, %v971
          %v978 = vsel %vm977, 1, 0
          %v979 = vadd.s32 %v975, %v971
          %v980 = vadd.s32 %v976, %v978
          %v981 = vadd.s32 %v980, %v970
          %v982 = vadd.s32 %v981, %v972
          %v983 = vmul.u32 %v938, %v929
          %v984 = vadd.s32 %v960, %v979
          %vm985 = vc.u32 %v960, %v979
          %v986 = vadd.s32 %v982, 1
          %v987 = vsel %vm985, %v986, %v982
          %v988 = vadd.s32 %v983, %v987
          %v989 = vadd.s32 %v988, 536870912
          %v990 = vshrl.u32 %v989, 30
          %v991 = vshll.u32 %v990, 30
          %v992 = vsub.s32 %v988, %v991
          %vm993 = vcmp.lt.s32.totalorder %v992, 0
          %v994 = vsub.s32 0, %v992
          %v995 = vsel %vm993, %v994, %v992
          %v996 = vclz %v995
          %v997 = vsub.s32 %v996, 2
          %vm998 = vcmp.gt.s32.totalorder 0, %v997
          %v999 = vsel %vm998, 0, %v997
          %v1000 = vsub.s32 32, %v999
          %v1001 = vshll.u32 %v992, %v999
          %v1002 = vshrl.u32 %v984, %v1000
          %v1003 = vor.u32 %v1001, %v1002
          %v1004 = vsub.s32 4294967266, %v999
          %v1005 = vadd.s32 %v1004, 127
          %v1006 = vshll.u32 %v1005, 23
          %v1007 = vor.u32 4788187, %v1006
          %v1008 = vand.u32 2147483647, %v1007
          %v1010 = vcvt.s32.f32 %v1003
          %v1011 = vmul.f32 %v1010, %v1008
          %v1012 = vxor.u32 %v1011, 2147483648
          %v1013 = vsel %vm892, %v1012, %v1011
          %v1014 = vsub.s32 4, %v990
          %v1015 = vsel %vm892, %v1014, %v990
          %v1016 = vsel %vm891, %v889, %v1013
          %v1017 = vsel %vm891, 0, %v1015
          %v1018 = vmul.f32 %v1016, %v1016
          %v1019 = vmul.f32 %v1018, -0.001358992
          %v1020 = vadd.f32 %v1019, 0.041655596
          %v1021 = vmul.f32 %v1018, %v1020
          %v1022 = vadd.f32 %v1021, -0.4999988
          %v1023 = vmul.f32 %v1018, %v1022
          %v1024 = vadd.f32 1.0, %v1023
          %v1025 = vmul.f32 %v1016, %v1016
          %v1026 = vmul.f32 %v1025, -0.00019511016
          %v1027 = vadd.f32 %v1026, 0.008332121
          %v1028 = vmul.f32 %v1025, %v1027
          %v1029 = vadd.f32 %v1028, -0.16666654
          %v1030 = vmul.f32 %v1025, %v1029
          %v1031 = vadd.f32 %v1030, 1.0
          %v1032 = vmul.f32 %v1031, %v1016
          %vm1033 = vweird.f32 %v889
          %v1034 = vand.u32 %v1017, 3
          %vm1035 = vcmp.lt.s32.totalorder %v1034, 2
          %vm1036 = vcmp.eq.s32.totalorder %v1034, 0
          %v1037 = vxor.u32 %v1032, 2147483648
          %v1038 = vsel %vm1036, %v1024, %v1037
          %vm1039 = vcmp.eq.s32.totalorder %v1034, 2
          %v1040 = vxor.u32 %v1024, 2147483648
          %v1041 = vsel %vm1039, %v1040, %v1032
          %v1042 = vsel %vm1035, %v1038, %v1041
          %v1043 = vsel %vm1033, nan, %v1042
          %v1044 = vand.u32 2147483647, %v889
          %vm1045 = vcmp.le.f32.partialorder %v1044, 0.7853982
          %vm1046 = vcmp.lt.s32.totalorder %v889, 0
          %v1047 = vand.u32 %v889, 2139095040
          %v1048 = vshrl.u32 %v1047, 23
          %v1049 = vsub.s32 %v1048, 127
          %v1050 = vand.u32 2147483647, %v889
          %v1051 = vand.u32 %v1050, 8388607
          %v1052 = vor.u32 %v1051, 8388608
          %v1053 = vsub.s32 0, %v1052
          %v1054 = vadd.s32 %v1049, 1
          %vm1055 = vcmp.gt.s32.totalorder %v1054, 0
          %v1056 = vsel %vm1055, %v1054, 0
          %v1057 = vshrl.u32 %v1056, 5
          %v1058 = vand.u32 %v1056, 31
          %v1059 = vsub.s32 32, %v1058
          %v1060 = vshrl.u32 683565275, %v1059
          %v1061 = vshll.u32 683565275, %v1058
          %v1062 = vshrl.u32 2475754826, %v1059
          %v1063 = vor.u32 %v1061, %v1062
          %v1064 = vshll.u32 2475754826, %v1058
          %v1065 = vshrl.u32 2131351028, %v1059
          %v1066 = vor.u32 %v1064, %v1065
          %v1067 = vshll.u32 2131351028, %v1058
          %v1068 = vshrl.u32 2102212464, %v1059
          %v1069 = vor.u32 %v1067, %v1068
          %v1070 = vshll.u32 2102212464, %v1058
          %v1071 = vshrl.u32 920167782, %v1059
          %v1072 = vor.u32 %v1070, %v1071
          %v1073 = vshll.u32 920167782, %v1058
          %v1074 = vshrl.u32 1326507024, %v1059
          %v1075 = vor.u32 %v1073, %v1074
          %vm1076 = vcmp.lt.s32.totalorder %v1057, 1
          %vm1077 = vcmp.lt.s32.totalorder %v1057, 2
          %vm1078 = vcmp.lt.s32.totalorder %v1057, 3
          %vm1079 = vcmp.lt.s32.totalorder %v1057, 4
          %v1080 = vsel %vm1076, %v1060, %v1063
          %v1081 = vsel %vm1079, %v1069, 2102212464
          %v1082 = vsel %vm1078, %v1066, %v1081
          %v1083 = vsel %vm1077, %v1080, %v1082
          %v1084 = vsel %vm1076, %v1063, %v1066
          %v1085 = vsel %vm1079, %v1072, 920167782
          %v1086 = vsel %vm1078, %v1069, %v1085
          %v1087 = vsel %vm1077, %v1084, %v1086
          %v1088 = vsel %vm1076, %v1066, %v1069
          %v1089 = vsel %vm1079, %v1075, 1326507024
          %v1090 = vsel %vm1078, %v1072, %v1089
          %v1091 = vsel %vm1077, %v1088, %v1090
          %v1092 = vshll.u32 %v1052, 8
          %v1093 = vand.u32 %v1092, 65535
          %v1094 = vshrl.u32 %v1092, 16
          %v1095 = vand.u32 %v1091, 65535
          %v1096 = vshrl.u32 %v1091, 16
          %v1097 = vmul.u32 %v1093, %v1095
          %v1098 = vmul.u32 %v1093, %v1096
          %v1099 = vmul.u32 %v1094, %v1095
          %v1100 = vmul.u32 %v1094, %v1096
          %v1101 = vshll.u32 %v1098, 16
          %v1102 = vshrl.u32 %v1098, 16
          %v1103 = vshll.u32 %v1099, 16
          %v1104 = vshrl.u32 %v1099, 16
          %vm1105 = vc.u32 %v1097, %v1101
          %v1106 = vsel %vm1105, 1, 0
          %v1107 = vadd.s32 %v1097, %v1101
          %v1108 = vadd.s32 %v1100, %v1106
          %vm1109 = vc.u32 %v1107, %v1103
          %v1110 = vsel %vm1109, 1, 0
          %v1111 = vadd.s32 %v1107, %v1103
          %v1112 = vadd.s32 %v1108, %v1110
          %v1113 = vadd.s32 %v1112, %v1102
          %v1114 = vadd.s32 %v1113, %v1104
          %v1115 = vand.u32 %v1092, 65535
          %v1116 = vshrl.u32 %v1092, 16
          %v1117 = vand.u32 %v1087, 65535
          %v1118 = vshrl.u32 %v1087, 16
          %v1119 = vmul.u32 %v1115, %v1117
          %v1120 = vmul.u32 %v1115, %v1118
          %v1121 = vmul.u32 %v1116, %v1117
          %v1122 = vmul.u32 %v1116, %v1118
          %v1123 = vshll.u32 %v1120, 16
          %v1124 = vshrl.u32 %v1120, 16
          %v1125 = vshll.u32 %v1121, 16
          %v1126 = vshrl.u32 %v1121, 16
          %vm1127 = vc.u32 %v1119, %v1123
          %v1128 = vsel %vm1127, 1, 0
          %v1129 = vadd.s32 %v1119, %v1123
          %v1130 = vadd.s32 %v1122, %v1128
          %vm1131 = vc.u32 %v1129, %v1125
          %v1132 = vsel %vm1131, 1, 0
          %v1133 = vadd.s32 %v1129, %v1125
          %v1134 = vadd.s32 %v1130, %v1132
          %v1135 = vadd.s32 %v1134, %v1124
          %v1136 = vadd.s32 %v1135, %v1126
          %v1137 = vmul.u32 %v1092, %v1083
          %v1138 = vadd.s32 %v1114, %v1133
          %vm1139 = vc.u32 %v1114, %v1133
          %v1140 = vadd.s32 %v1136, 1
          %v1141 = vsel %vm1139, %v1140, %v1136
          %v1142 = vadd.s32 %v1137, %v1141
          %v1143 = vadd.s32 %v1142, 536870912
          %v1144 = vshrl.u32 %v1143, 30
          %v1145 = vshll.u32 %v1144, 30
          %v1146 = vsub.s32 %v1142, %v1145
          %vm1147 = vcmp.lt.s32.totalorder %v1146, 0
          %v1148 = vsub.s32 0, %v1146
          %v1149 = vsel %vm1147, %v1148, %v1146
          %v1150 = vclz %v1149
          %v1151 = vsub.s32 %v1150, 2
          %vm1152 = vcmp.gt.s32.totalorder 0, %v1151
          %v1153 = vsel %vm1152, 0, %v1151
          %v1154 = vsub.s32 32, %v1153
          %v1155 = vshll.u32 %v1146, %v1153
          %v1156 = vshrl.u32 %v1138, %v1154
          %v1157 = vor.u32 %v1155, %v1156
          %v1158 = vsub.s32 4294967266, %v1153
          %v1159 = vadd.s32 %v1158, 127
          %v1160 = vshll.u32 %v1159, 23
          %v1161 = vor.u32 4788187, %v1160
          %v1162 = vand.u32 2147483647, %v1161
          %v1164 = vcvt.s32.f32 %v1157
          %v1165 = vmul.f32 %v1164, %v1162
          %v1166 = vxor.u32 %v1165, 2147483648
          %v1167 = vsel %vm1046, %v1166, %v1165
          %v1168 = vsub.s32 4, %v1144
          %v1169 = vsel %vm1046, %v1168, %v1144
          %v1170 = vsel %vm1045, %v889, %v1167
          %v1171 = vsel %vm1045, 0, %v1169
          %v1172 = vmul.f32 %v1170, %v1170
          %v1173 = vmul.f32 %v1172, -0.001358992
          %v1174 = vadd.f32 %v1173, 0.041655596
          %v1175 = vmul.f32 %v1172, %v1174
          %v1176 = vadd.f32 %v1175, -0.4999988
          %v1177 = vmul.f32 %v1172, %v1176
          %v1178 = vadd.f32 1.0, %v1177
          %v1179 = vmul.f32 %v1170, %v1170
          %v1180 = vmul.f32 %v1179, -0.00019511016
          %v1181 = vadd.f32 %v1180, 0.008332121
          %v1182 = vmul.f32 %v1179, %v1181
          %v1183 = vadd.f32 %v1182, -0.16666654
          %v1184 = vmul.f32 %v1179, %v1183
          %v1185 = vadd.f32 %v1184, 1.0
          %v1186 = vmul.f32 %v1185, %v1170
          %vm1187 = vweird.f32 %v889
          %v1188 = vadd.s32 %v1171, 3
          %v1189 = vand.u32 %v1188, 3
          %vm1190 = vcmp.lt.s32.totalorder %v1189, 2
          %vm1191 = vcmp.eq.s32.totalorder %v1189, 0
          %v1192 = vxor.u32 %v1186, 2147483648
          %v1193 = vsel %vm1191, %v1178, %v1192
          %vm1194 = vcmp.eq.s32.totalorder %v1189, 2
          %v1195 = vxor.u32 %v1178, 2147483648
          %v1196 = vsel %vm1194, %v1195, %v1186
          %v1197 = vsel %vm1190, %v1193, %v1196
          %v1198 = vsel %vm1187, nan, %v1197
          %v1199 = vld [vmem:[#allocation8] sm:$0xff]
          %v1200 = vld [vmem:[#allocation8 + $0x8] sm:$0xff]
          %v1201 = vld [vmem:[#allocation8 + $0x10] sm:$0xff]
          %v1202 = vld [vmem:[#allocation8 + $0x18] sm:$0xff]
          %v1203 = vld [vmem:[#allocation8 + $0x20] sm:$0xff]
          %v1204 = vld [vmem:[#allocation8 + $0x28] sm:$0xff]
          %v1205 = vld [vmem:[#allocation8 + $0x30] sm:$0xff]
          %v1206 = vld [vmem:[#allocation8 + $0x38] sm:$0xff]
          %v1207 = vld [vmem:[#allocation8 + $0x40] sm:$0xff]
          %v1208 = vld [vmem:[#allocation8 + $0x48] sm:$0xff]
          %v1209 = vld [vmem:[#allocation8 + $0x50] sm:$0xff]
          %v1210 = vld [vmem:[#allocation8 + $0x58] sm:$0xff]
          %v1211 = vld [vmem:[#allocation8 + $0x60] sm:$0xff]
          %v1212 = vld [vmem:[#allocation8 + $0x68] sm:$0xff]
          %v1213 = vld [vmem:[#allocation8 + $0x70] sm:$0xff]
          %v1214 = vld [vmem:[#allocation8 + $0x78] sm:$0xff]
          %v1215 = vld [vmem:[#allocation8 + $0x80] sm:$0xff]
          %v1216 = vld [vmem:[#allocation8 + $0x88] sm:$0xff]
          %v1217 = vld [vmem:[#allocation8 + $0x90] sm:$0xff]
          %v1218 = vld [vmem:[#allocation8 + $0x98] sm:$0xff]
          %v1219 = vld [vmem:[#allocation8 + $0xa0] sm:$0xff]
          %v1220 = vld [vmem:[#allocation8 + $0xa8] sm:$0xff]
          %v1221 = vld [vmem:[#allocation8 + $0xb0] sm:$0xff]
          %v1222 = vld [vmem:[#allocation8 + $0xb8] sm:$0xff]
          %v1223 = vld [vmem:[#allocation8 + $0xc0] sm:$0xff]
          %v1224 = vld [vmem:[#allocation8 + $0xc8] sm:$0xff]
          %v1225 = vld [vmem:[#allocation8 + $0xd0] sm:$0xff]
          %v1226 = vld [vmem:[#allocation8 + $0xd8] sm:$0xff]
          %v1227 = vld [vmem:[#allocation8 + $0xe0] sm:$0xff]
          %v1228 = vld [vmem:[#allocation8 + $0xe8] sm:$0xff]
          %v1229 = vld [vmem:[#allocation8 + $0xf0] sm:$0xff]
          %v1230 = vld [vmem:[#allocation8 + $0xf8] sm:$0xff]
          %v1231 = vld [vmem:[#allocation8 + $0x100] sm:$0xff]
          %v1232 = vld [vmem:[#allocation8 + $0x108] sm:$0xff]
          %v1233 = vld [vmem:[#allocation8 + $0x110] sm:$0xff]
          %v1234 = vld [vmem:[#allocation8 + $0x118] sm:$0xff]
          %v1235 = vld [vmem:[#allocation8 + $0x120] sm:$0xff]
          %v1236 = vld [vmem:[#allocation8 + $0x128] sm:$0xff]
          %v1237 = vld [vmem:[#allocation8 + $0x130] sm:$0xff]
          %v1238 = vld [vmem:[#allocation8 + $0x138] sm:$0xff]
          %v1239 = vld [vmem:[#allocation8 + $0x140] sm:$0xff]
          %v1240 = vld [vmem:[#allocation8 + $0x148] sm:$0xff]
          %v1241 = vld [vmem:[#allocation8 + $0x150] sm:$0xff]
          %v1242 = vld [vmem:[#allocation8 + $0x158] sm:$0xff]
          %v1243 = vld [vmem:[#allocation8 + $0x160] sm:$0xff]
          %v1244 = vld [vmem:[#allocation8 + $0x168] sm:$0xff]
          %v1245 = vld [vmem:[#allocation8 + $0x170] sm:$0xff]
          %v1246 = vld [vmem:[#allocation8 + $0x178] sm:$0xff]
          %v1247 = vld [vmem:[#allocation8 + $0x180] sm:$0xff]
          %v1248 = vld [vmem:[#allocation8 + $0x188] sm:$0xff]
          %v1249 = vld [vmem:[#allocation8 + $0x190] sm:$0xff]
          %v1250 = vld [vmem:[#allocation8 + $0x198] sm:$0xff]
          %v1251 = vld [vmem:[#allocation8 + $0x1a0] sm:$0xff]
          %v1252 = vld [vmem:[#allocation8 + $0x1a8] sm:$0xff]
          %v1253 = vld [vmem:[#allocation8 + $0x1b0] sm:$0xff]
          %v1254 = vld [vmem:[#allocation8 + $0x1b8] sm:$0xff]
          %v1255 = vld [vmem:[#allocation8 + $0x1c0] sm:$0xff]
          %v1256 = vld [vmem:[#allocation8 + $0x1c8] sm:$0xff]
          %v1257 = vld [vmem:[#allocation8 + $0x1d0] sm:$0xff]
          %v1258 = vld [vmem:[#allocation8 + $0x1d8] sm:$0xff]
          %v1259 = vld [vmem:[#allocation8 + $0x1e0] sm:$0xff]
          %v1260 = vld [vmem:[#allocation8 + $0x1e8] sm:$0xff]
          %v1261 = vld [vmem:[#allocation8 + $0x1f0] sm:$0xff]
          %v1262 = vld [vmem:[#allocation8 + $0x1f8] sm:$0xff]
          %v1263 = vld [vmem:[%s5] sm:$0x3]
          %v1265 = vperm.slane %v1263, 0
          %v1266 = vperm.slane %v1263, 1
          %1269 = vmatpush.msra.mxu0 %v1229
          %1270 = vmatpush.msra.mxu0 %v1227
          %1271 = vmatpush.msra.mxu0 %v1225
          %1272 = vmatpush.msra.mxu0 %v1223
          %1273 = vmatpush.msra.mxu0 %v1221
          %1274 = vmatpush.msra.mxu0 %v1219
          %1275 = vmatpush.msra.mxu0 %v1217
          %1276 = vmatpush.msra.mxu0 %v1215
          %1277 = vmatpush.msra.mxu0 %v1213
          %1278 = vmatpush.msra.mxu0 %v1211
          %1279 = vmatpush.msra.mxu0 %v1209
          %1280 = vmatpush.msra.mxu0 %v1207
          %1281 = vmatpush.msra.mxu0 %v1205
          %1282 = vmatpush.msra.mxu0 %v1203
          %1283 = vmatpush.msra.mxu0 %v1201
          %1284 = vmatpush.msra.mxu0 %v1199
          %1285 = vmatmul.f32.gmra.mxu0 %v1043
          %v1286 = vpop.f32.mrf.mxu0
          %v1287 = vadd.f32 %v1265, %v1286
          %1288 = vdwg.mxu0
          %1289 = vmatpush.msra.mxu0 %v1261
          %1290 = vmatpush.msra.mxu0 %v1259
          %1291 = vmatpush.msra.mxu0 %v1257
          %1292 = vmatpush.msra.mxu0 %v1255
          %1293 = vmatpush.msra.mxu0 %v1253
          %1294 = vmatpush.msra.mxu0 %v1251
          %1295 = vmatpush.msra.mxu0 %v1249
          %1296 = vmatpush.msra.mxu0 %v1247
          %1297 = vmatpush.msra.mxu0 %v1245
          %1298 = vmatpush.msra.mxu0 %v1243
          %1299 = vmatpush.msra.mxu0 %v1241
          %1300 = vmatpush.msra.mxu0 %v1239
          %1301 = vmatpush.msra.mxu0 %v1237
          %1302 = vmatpush.msra.mxu0 %v1235
          %1303 = vmatpush.msra.mxu0 %v1233
          %1304 = vmatpush.msra.mxu0 %v1231
          %1305 = vmatmul.f32.gmra.mxu0 %v1198
          %v1306 = vpop.f32.mrf.mxu0
          %v1307 = vadd.f32 %v1287, %v1306
          %1308 = vdwg.mxu0
          %1309 = vmatpush.msra.mxu0 %v1230
          %1310 = vmatpush.msra.mxu0 %v1228
          %1311 = vmatpush.msra.mxu0 %v1226
          %1312 = vmatpush.msra.mxu0 %v1224
          %1313 = vmatpush.msra.mxu0 %v1222
          %1314 = vmatpush.msra.mxu0 %v1220
          %1315 = vmatpush.msra.mxu0 %v1218
          %1316 = vmatpush.msra.mxu0 %v1216
          %1317 = vmatpush.msra.mxu0 %v1214
          %1318 = vmatpush.msra.mxu0 %v1212
          %1319 = vmatpush.msra.mxu0 %v1210
          %1320 = vmatpush.msra.mxu0 %v1208
          %1321 = vmatpush.msra.mxu0 %v1206
          %1322 = vmatpush.msra.mxu0 %v1204
          %1323 = vmatpush.msra.mxu0 %v1202
          %1324 = vmatpush.msra.mxu0 %v1200
          %1325 = vmatmul.f32.gmra.mxu0 %v1043
          %v1326 = vpop.f32.mrf.mxu0
          %v1327 = vadd.f32 %v1266, %v1326
          %1328 = vdwg.mxu0
          %1329 = vmatpush.msra.mxu0 %v1262
          %1330 = vmatpush.msra.mxu0 %v1260
          %1331 = vmatpush.msra.mxu0 %v1258
          %1332 = vmatpush.msra.mxu0 %v1256
          %1333 = vmatpush.msra.mxu0 %v1254
          %1334 = vmatpush.msra.mxu0 %v1252
          %1335 = vmatpush.msra.mxu0 %v1250
          %1336 = vmatpush.msra.mxu0 %v1248
          %1337 = vmatpush.msra.mxu0 %v1246
          %1338 = vmatpush.msra.mxu0 %v1244
          %1339 = vmatpush.msra.mxu0 %v1242
          %1340 = vmatpush.msra.mxu0 %v1240
          %1341 = vmatpush.msra.mxu0 %v1238
          %1342 = vmatpush.msra.mxu0 %v1236
          %1343 = vmatpush.msra.mxu0 %v1234
          %1344 = vmatpush.msra.mxu0 %v1232
          %1345 = vmatmul.f32.gmra.mxu0 %v1198
          %v1346 = vpop.f32.mrf.mxu0
          %v1347 = vadd.f32 %v1327, %v1346
          %1348 = vdwg.mxu0
          %v1349 = vxor.u32 %v1307, 2147483648
          %v1350 = vxor.u32 %v1347, 2147483648
          %v1351 = vmul.f32 %v1349, 1.442695
          %v1352 = vpow.pop %v1351
          %v1353 = vmul.f32 %v1350, 1.442695
          %v1354 = vpow.pop %v1353
          %v1355 = vadd.f32 %v1352, 1.0
          %v1356 = vadd.f32 %v1354, 1.0
          %v1357 = vrcp.pop %v1355
          %v1358 = vmul.f32 %v1355, %v1357
          %v1359 = vsub.f32 1.0, %v1358
          %v1360 = vmul.f32 %v1357, %v1359
          %v1361 = vadd.f32 %v1357, %v1360
          %vm1362 = vweird.f32 %v1355
          %vm1363 = vweird.f32 %v1357
          %vm1364 = vmor %vm1362, %vm1363
          %v1365 = vsel %vm1364, %v1357, %v1361
          %v1366 = vand.u32 2147483647, %v1355
          %vm1367 = vcmp.eq.f32.partialorder %v1366, 8.507059e+37
          %v1368 = vand.u32 %v1355, 2147483648
          %v1369 = vor.u32 1.1754944e-38, %v1368
          %v1370 = vsel %vm1367, %v1369, %v1365
          %v1371 = vmul.f32 1.0, %v1370
          %v1372 = vrcp.pop %v1356
          %v1373 = vmul.f32 %v1356, %v1372
          %v1374 = vsub.f32 1.0, %v1373
          %v1375 = vmul.f32 %v1372, %v1374
          %v1376 = vadd.f32 %v1372, %v1375
          %vm1377 = vweird.f32 %v1356
          %vm1378 = vweird.f32 %v1372
          %vm1379 = vmor %vm1377, %vm1378
          %v1380 = vsel %vm1379, %v1372, %v1376
          %v1381 = vand.u32 2147483647, %v1356
          %vm1382 = vcmp.eq.f32.partialorder %v1381, 8.507059e+37
          %v1383 = vand.u32 %v1356, 2147483648
          %v1384 = vor.u32 1.1754944e-38, %v1383
          %v1385 = vsel %vm1382, %v1384, %v1380
          %v1386 = vmul.f32 1.0, %v1385
          %v1387 = vmul.f32 %v1307, %v1371
          %v1388 = vmul.f32 %v1347, %v1386
          %v1389 = vld [vmem:[#allocation9] sm:$0xff]
          %v1390 = vld [vmem:[#allocation9 + $0x8] sm:$0xff]
          %v1391 = vld [vmem:[#allocation9 + $0x10] sm:$0xff]
          %v1392 = vld [vmem:[#allocation9 + $0x18] sm:$0xff]
          %v1393 = vld [vmem:[#allocation9 + $0x20] sm:$0xff]
          %v1394 = vld [vmem:[#allocation9 + $0x28] sm:$0xff]
          %v1395 = vld [vmem:[#allocation9 + $0x30] sm:$0xff]
          %v1396 = vld [vmem:[#allocation9 + $0x38] sm:$0xff]
          %v1397 = vld [vmem:[#allocation9 + $0x40] sm:$0xff]
          %v1398 = vld [vmem:[#allocation9 + $0x48] sm:$0xff]
          %v1399 = vld [vmem:[#allocation9 + $0x50] sm:$0xff]
          %v1400 = vld [vmem:[#allocation9 + $0x58] sm:$0xff]
          %v1401 = vld [vmem:[#allocation9 + $0x60] sm:$0xff]
          %v1402 = vld [vmem:[#allocation9 + $0x68] sm:$0xff]
          %v1403 = vld [vmem:[#allocation9 + $0x70] sm:$0xff]
          %v1404 = vld [vmem:[#allocation9 + $0x78] sm:$0xff]
          %v1405 = vld [vmem:[#allocation9 + $0x80] sm:$0xff]
          %v1406 = vld [vmem:[#allocation9 + $0x88] sm:$0xff]
          %v1407 = vld [vmem:[#allocation9 + $0x90] sm:$0xff]
          %v1408 = vld [vmem:[#allocation9 + $0x98] sm:$0xff]
          %v1409 = vld [vmem:[#allocation9 + $0xa0] sm:$0xff]
          %v1410 = vld [vmem:[#allocation9 + $0xa8] sm:$0xff]
          %v1411 = vld [vmem:[#allocation9 + $0xb0] sm:$0xff]
          %v1412 = vld [vmem:[#allocation9 + $0xb8] sm:$0xff]
          %v1413 = vld [vmem:[#allocation9 + $0xc0] sm:$0xff]
          %v1414 = vld [vmem:[#allocation9 + $0xc8] sm:$0xff]
          %v1415 = vld [vmem:[#allocation9 + $0xd0] sm:$0xff]
          %v1416 = vld [vmem:[#allocation9 + $0xd8] sm:$0xff]
          %v1417 = vld [vmem:[#allocation9 + $0xe0] sm:$0xff]
          %v1418 = vld [vmem:[#allocation9 + $0xe8] sm:$0xff]
          %v1419 = vld [vmem:[#allocation9 + $0xf0] sm:$0xff]
          %v1420 = vld [vmem:[#allocation9 + $0xf8] sm:$0xff]
          %v1421 = vld [vmem:[#allocation9 + $0x100] sm:$0xff]
          %v1422 = vld [vmem:[#allocation9 + $0x108] sm:$0xff]
          %v1423 = vld [vmem:[#allocation9 + $0x110] sm:$0xff]
          %v1424 = vld [vmem:[#allocation9 + $0x118] sm:$0xff]
          %v1425 = vld [vmem:[#allocation9 + $0x120] sm:$0xff]
          %v1426 = vld [vmem:[#allocation9 + $0x128] sm:$0xff]
          %v1427 = vld [vmem:[#allocation9 + $0x130] sm:$0xff]
          %v1428 = vld [vmem:[#allocation9 + $0x138] sm:$0xff]
          %v1429 = vld [vmem:[#allocation9 + $0x140] sm:$0xff]
          %v1430 = vld [vmem:[#allocation9 + $0x148] sm:$0xff]
          %v1431 = vld [vmem:[#allocation9 + $0x150] sm:$0xff]
          %v1432 = vld [vmem:[#allocation9 + $0x158] sm:$0xff]
          %v1433 = vld [vmem:[#allocation9 + $0x160] sm:$0xff]
          %v1434 = vld [vmem:[#allocation9 + $0x168] sm:$0xff]
          %v1435 = vld [vmem:[#allocation9 + $0x170] sm:$0xff]
          %v1436 = vld [vmem:[#allocation9 + $0x178] sm:$0xff]
          %v1437 = vld [vmem:[#allocation9 + $0x180] sm:$0xff]
          %v1438 = vld [vmem:[#allocation9 + $0x188] sm:$0xff]
          %v1439 = vld [vmem:[#allocation9 + $0x190] sm:$0xff]
          %v1440 = vld [vmem:[#allocation9 + $0x198] sm:$0xff]
          %v1441 = vld [vmem:[#allocation9 + $0x1a0] sm:$0xff]
          %v1442 = vld [vmem:[#allocation9 + $0x1a8] sm:$0xff]
          %v1443 = vld [vmem:[#allocation9 + $0x1b0] sm:$0xff]
          %v1444 = vld [vmem:[#allocation9 + $0x1b8] sm:$0xff]
          %v1445 = vld [vmem:[#allocation9 + $0x1c0] sm:$0xff]
          %v1446 = vld [vmem:[#allocation9 + $0x1c8] sm:$0xff]
          %v1447 = vld [vmem:[#allocation9 + $0x1d0] sm:$0xff]
          %v1448 = vld [vmem:[#allocation9 + $0x1d8] sm:$0xff]
          %v1449 = vld [vmem:[#allocation9 + $0x1e0] sm:$0xff]
          %v1450 = vld [vmem:[#allocation9 + $0x1e8] sm:$0xff]
          %v1451 = vld [vmem:[#allocation9 + $0x1f0] sm:$0xff]
          %v1452 = vld [vmem:[#allocation9 + $0x1f8] sm:$0xff]
          %v1453 = vld [vmem:[%s7] sm:$0x3]
          %v1455 = vperm.slane %v1453, 0
          %v1456 = vperm.slane %v1453, 1
          %1459 = vmatpush.msra.mxu0 %v1419
          %1460 = vmatpush.msra.mxu0 %v1417
          %1461 = vmatpush.msra.mxu0 %v1415
          %1462 = vmatpush.msra.mxu0 %v1413
          %1463 = vmatpush.msra.mxu0 %v1411
          %1464 = vmatpush.msra.mxu0 %v1409
          %1465 = vmatpush.msra.mxu0 %v1407
          %1466 = vmatpush.msra.mxu0 %v1405
          %1467 = vmatpush.msra.mxu0 %v1403
          %1468 = vmatpush.msra.mxu0 %v1401
          %1469 = vmatpush.msra.mxu0 %v1399
          %1470 = vmatpush.msra.mxu0 %v1397
          %1471 = vmatpush.msra.mxu0 %v1395
          %1472 = vmatpush.msra.mxu0 %v1393
          %1473 = vmatpush.msra.mxu0 %v1391
          %1474 = vmatpush.msra.mxu0 %v1389
          %1475 = vmatmul.f32.gmra.mxu0 %v1387
          %v1476 = vpop.f32.mrf.mxu0
          %v1477 = vadd.f32 %v1455, %v1476
          %1478 = vdwg.mxu0
          %1479 = vmatpush.msra.mxu0 %v1451
          %1480 = vmatpush.msra.mxu0 %v1449
          %1481 = vmatpush.msra.mxu0 %v1447
          %1482 = vmatpush.msra.mxu0 %v1445
          %1483 = vmatpush.msra.mxu0 %v1443
          %1484 = vmatpush.msra.mxu0 %v1441
          %1485 = vmatpush.msra.mxu0 %v1439
          %1486 = vmatpush.msra.mxu0 %v1437
          %1487 = vmatpush.msra.mxu0 %v1435
          %1488 = vmatpush.msra.mxu0 %v1433
          %1489 = vmatpush.msra.mxu0 %v1431
          %1490 = vmatpush.msra.mxu0 %v1429
          %1491 = vmatpush.msra.mxu0 %v1427
          %1492 = vmatpush.msra.mxu0 %v1425
          %1493 = vmatpush.msra.mxu0 %v1423
          %1494 = vmatpush.msra.mxu0 %v1421
          %1495 = vmatmul.f32.gmra.mxu0 %v1388
          %v1496 = vpop.f32.mrf.mxu0
          %v1497 = vadd.f32 %v1477, %v1496
          %1498 = vdwg.mxu0
          %1499 = vmatpush.msra.mxu0 %v1420
          %1500 = vmatpush.msra.mxu0 %v1418
          %1501 = vmatpush.msra.mxu0 %v1416
          %1502 = vmatpush.msra.mxu0 %v1414
          %1503 = vmatpush.msra.mxu0 %v1412
          %1504 = vmatpush.msra.mxu0 %v1410
          %1505 = vmatpush.msra.mxu0 %v1408
          %1506 = vmatpush.msra.mxu0 %v1406
          %1507 = vmatpush.msra.mxu0 %v1404
          %1508 = vmatpush.msra.mxu0 %v1402
          %1509 = vmatpush.msra.mxu0 %v1400
          %1510 = vmatpush.msra.mxu0 %v1398
          %1511 = vmatpush.msra.mxu0 %v1396
          %1512 = vmatpush.msra.mxu0 %v1394
          %1513 = vmatpush.msra.mxu0 %v1392
          %1514 = vmatpush.msra.mxu0 %v1390
          %1515 = vmatmul.f32.gmra.mxu0 %v1387
          %v1516 = vpop.f32.mrf.mxu0
          %v1517 = vadd.f32 %v1456, %v1516
          %1518 = vdwg.mxu0
          %1519 = vmatpush.msra.mxu0 %v1452
          %1520 = vmatpush.msra.mxu0 %v1450
          %1521 = vmatpush.msra.mxu0 %v1448
          %1522 = vmatpush.msra.mxu0 %v1446
          %1523 = vmatpush.msra.mxu0 %v1444
          %1524 = vmatpush.msra.mxu0 %v1442
          %1525 = vmatpush.msra.mxu0 %v1440
          %1526 = vmatpush.msra.mxu0 %v1438
          %1527 = vmatpush.msra.mxu0 %v1436
          %1528 = vmatpush.msra.mxu0 %v1434
          %1529 = vmatpush.msra.mxu0 %v1432
          %1530 = vmatpush.msra.mxu0 %v1430
          %1531 = vmatpush.msra.mxu0 %v1428
          %1532 = vmatpush.msra.mxu0 %v1426
          %1533 = vmatpush.msra.mxu0 %v1424
          %1534 = vmatpush.msra.mxu0 %v1422
          %1535 = vmatmul.f32.gmra.mxu0 %v1388
          %v1536 = vpop.f32.mrf.mxu0
          %v1537 = vadd.f32 %v1517, %v1536
          %1538 = vdwg.mxu0
          %v1539 = vld [vmem:[%s862] sm:$0xff]
          %v1540 = vld [vmem:[#allocation6] sm:$0xff]
          %v1541 = vld [vmem:[#allocation11] sm:$0xff]
          %v1542 = vld [vmem:[#allocation11 + $0x8] sm:$0xff]
          %v1543 = vld [vmem:[#allocation11 + $0x10] sm:$0xff]
          %v1544 = vld [vmem:[#allocation11 + $0x18] sm:$0xff]
          %v1545 = vld [vmem:[#allocation11 + $0x20] sm:$0xff]
          %v1546 = vld [vmem:[#allocation11 + $0x28] sm:$0xff]
          %v1547 = vld [vmem:[#allocation11 + $0x30] sm:$0xff]
          %v1548 = vld [vmem:[#allocation11 + $0x38] sm:$0xff]
          %v1549 = vld [vmem:[#allocation11 + $0x40] sm:$0xff]
          %v1550 = vld [vmem:[#allocation11 + $0x48] sm:$0xff]
          %v1551 = vld [vmem:[#allocation11 + $0x50] sm:$0xff]
          %v1552 = vld [vmem:[#allocation11 + $0x58] sm:$0xff]
          %v1553 = vld [vmem:[#allocation11 + $0x60] sm:$0xff]
          %v1554 = vld [vmem:[#allocation11 + $0x68] sm:$0xff]
          %v1555 = vld [vmem:[#allocation11 + $0x70] sm:$0xff]
          %v1556 = vld [vmem:[#allocation11 + $0x78] sm:$0xff]
          %v1557 = vld [vmem:[#allocation11 + $0x80] sm:$0xff]
          %v1558 = vld [vmem:[#allocation11 + $0x88] sm:$0xff]
          %v1559 = vld [vmem:[#allocation11 + $0x90] sm:$0xff]
          %v1560 = vld [vmem:[#allocation11 + $0x98] sm:$0xff]
          %v1561 = vld [vmem:[#allocation11 + $0xa0] sm:$0xff]
          %v1562 = vld [vmem:[#allocation11 + $0xa8] sm:$0xff]
          %v1563 = vld [vmem:[#allocation11 + $0xb0] sm:$0xff]
          %v1564 = vld [vmem:[#allocation11 + $0xb8] sm:$0xff]
          %v1565 = vld [vmem:[#allocation11 + $0xc0] sm:$0xff]
          %v1566 = vld [vmem:[#allocation11 + $0xc8] sm:$0xff]
          %v1567 = vld [vmem:[#allocation11 + $0xd0] sm:$0xff]
          %v1568 = vld [vmem:[#allocation11 + $0xd8] sm:$0xff]
          %v1569 = vld [vmem:[#allocation11 + $0xe0] sm:$0xff]
          %v1570 = vld [vmem:[#allocation11 + $0xe8] sm:$0xff]
          %v1571 = vld [vmem:[#allocation11 + $0xf0] sm:$0xff]
          %v1572 = vld [vmem:[#allocation11 + $0xf8] sm:$0xff]
          %v1573 = vld [vmem:[#allocation11 + $0x100] sm:$0xff]
          %v1574 = vld [vmem:[#allocation11 + $0x108] sm:$0xff]
          %v1575 = vld [vmem:[#allocation11 + $0x110] sm:$0xff]
          %v1576 = vld [vmem:[#allocation11 + $0x118] sm:$0xff]
          %v1577 = vld [vmem:[#allocation11 + $0x120] sm:$0xff]
          %v1578 = vld [vmem:[#allocation11 + $0x128] sm:$0xff]
          %v1579 = vld [vmem:[#allocation11 + $0x130] sm:$0xff]
          %v1580 = vld [vmem:[#allocation11 + $0x138] sm:$0xff]
          %v1581 = vld [vmem:[#allocation11 + $0x140] sm:$0xff]
          %v1582 = vld [vmem:[#allocation11 + $0x148] sm:$0xff]
          %v1583 = vld [vmem:[#allocation11 + $0x150] sm:$0xff]
          %v1584 = vld [vmem:[#allocation11 + $0x158] sm:$0xff]
          %v1585 = vld [vmem:[#allocation11 + $0x160] sm:$0xff]
          %v1586 = vld [vmem:[#allocation11 + $0x168] sm:$0xff]
          %v1587 = vld [vmem:[#allocation11 + $0x170] sm:$0xff]
          %v1588 = vld [vmem:[#allocation11 + $0x178] sm:$0xff]
          %v1589 = vld [vmem:[#allocation11 + $0x180] sm:$0xff]
          %v1590 = vld [vmem:[#allocation11 + $0x188] sm:$0xff]
          %v1591 = vld [vmem:[#allocation11 + $0x190] sm:$0xff]
          %v1592 = vld [vmem:[#allocation11 + $0x198] sm:$0xff]
          %v1593 = vld [vmem:[#allocation11 + $0x1a0] sm:$0xff]
          %v1594 = vld [vmem:[#allocation11 + $0x1a8] sm:$0xff]
          %v1595 = vld [vmem:[#allocation11 + $0x1b0] sm:$0xff]
          %v1596 = vld [vmem:[#allocation11 + $0x1b8] sm:$0xff]
          %v1597 = vld [vmem:[#allocation11 + $0x1c0] sm:$0xff]
          %v1598 = vld [vmem:[#allocation11 + $0x1c8] sm:$0xff]
          %v1599 = vld [vmem:[#allocation11 + $0x1d0] sm:$0xff]
          %v1600 = vld [vmem:[#allocation11 + $0x1d8] sm:$0xff]
          %v1601 = vld [vmem:[#allocation11 + $0x1e0] sm:$0xff]
          %v1602 = vld [vmem:[#allocation11 + $0x1e8] sm:$0xff]
          %v1603 = vld [vmem:[#allocation11 + $0x1f0] sm:$0xff]
          %v1604 = vld [vmem:[#allocation11 + $0x1f8] sm:$0xff]
          %v1605 = vld [vmem:[#allocation12] sm:$0x1]
          %v1607 = vperm.slane %v1605, 0
          %1609 = vmatpush.msra.mxu0 %v1556
          %1610 = vmatpush.msra.mxu0 %v1555
          %1611 = vmatpush.msra.mxu0 %v1554
          %1612 = vmatpush.msra.mxu0 %v1553
          %1613 = vmatpush.msra.mxu0 %v1552
          %1614 = vmatpush.msra.mxu0 %v1551
          %1615 = vmatpush.msra.mxu0 %v1550
          %1616 = vmatpush.msra.mxu0 %v1549
          %1617 = vmatpush.msra.mxu0 %v1548
          %1618 = vmatpush.msra.mxu0 %v1547
          %1619 = vmatpush.msra.mxu0 %v1546
          %1620 = vmatpush.msra.mxu0 %v1545
          %1621 = vmatpush.msra.mxu0 %v1544
          %1622 = vmatpush.msra.mxu0 %v1543
          %1623 = vmatpush.msra.mxu0 %v1542
          %1624 = vmatpush.msra.mxu0 %v1541
          %1625 = vmatmul.f32.gmra.mxu0 %v1539
          %v1626 = vpop.f32.mrf.mxu0
          %v1627 = vadd.f32 %v1607, %v1626
          %1628 = vdwg.mxu0
          %1629 = vmatpush.msra.mxu0 %v1572
          %1630 = vmatpush.msra.mxu0 %v1571
          %1631 = vmatpush.msra.mxu0 %v1570
          %1632 = vmatpush.msra.mxu0 %v1569
          %1633 = vmatpush.msra.mxu0 %v1568
          %1634 = vmatpush.msra.mxu0 %v1567
          %1635 = vmatpush.msra.mxu0 %v1566
          %1636 = vmatpush.msra.mxu0 %v1565
          %1637 = vmatpush.msra.mxu0 %v1564
          %1638 = vmatpush.msra.mxu0 %v1563
          %1639 = vmatpush.msra.mxu0 %v1562
          %1640 = vmatpush.msra.mxu0 %v1561
          %1641 = vmatpush.msra.mxu0 %v1560
          %1642 = vmatpush.msra.mxu0 %v1559
          %1643 = vmatpush.msra.mxu0 %v1558
          %1644 = vmatpush.msra.mxu0 %v1557
          %1645 = vmatmul.f32.gmra.mxu0 %v1497
          %v1646 = vpop.f32.mrf.mxu0
          %v1647 = vadd.f32 %v1627, %v1646
          %1648 = vdwg.mxu0
          %1649 = vmatpush.msra.mxu0 %v1588
          %1650 = vmatpush.msra.mxu0 %v1587
          %1651 = vmatpush.msra.mxu0 %v1586
          %1652 = vmatpush.msra.mxu0 %v1585
          %1653 = vmatpush.msra.mxu0 %v1584
          %1654 = vmatpush.msra.mxu0 %v1583
          %1655 = vmatpush.msra.mxu0 %v1582
          %1656 = vmatpush.msra.mxu0 %v1581
          %1657 = vmatpush.msra.mxu0 %v1580
          %1658 = vmatpush.msra.mxu0 %v1579
          %1659 = vmatpush.msra.mxu0 %v1578
          %1660 = vmatpush.msra.mxu0 %v1577
          %1661 = vmatpush.msra.mxu0 %v1576
          %1662 = vmatpush.msra.mxu0 %v1575
          %1663 = vmatpush.msra.mxu0 %v1574
          %1664 = vmatpush.msra.mxu0 %v1573
          %1665 = vmatmul.f32.gmra.mxu0 %v1537
          %v1666 = vpop.f32.mrf.mxu0
          %v1667 = vadd.f32 %v1647, %v1666
          %1668 = vdwg.mxu0
          %1669 = vmatpush.msra.mxu0 %v1604
          %1670 = vmatpush.msra.mxu0 %v1603
          %1671 = vmatpush.msra.mxu0 %v1602
          %1672 = vmatpush.msra.mxu0 %v1601
          %1673 = vmatpush.msra.mxu0 %v1600
          %1674 = vmatpush.msra.mxu0 %v1599
          %1675 = vmatpush.msra.mxu0 %v1598
          %1676 = vmatpush.msra.mxu0 %v1597
          %1677 = vmatpush.msra.mxu0 %v1596
          %1678 = vmatpush.msra.mxu0 %v1595
          %1679 = vmatpush.msra.mxu0 %v1594
          %1680 = vmatpush.msra.mxu0 %v1593
          %1681 = vmatpush.msra.mxu0 %v1592
          %1682 = vmatpush.msra.mxu0 %v1591
          %1683 = vmatpush.msra.mxu0 %v1590
          %1684 = vmatpush.msra.mxu0 %v1589
          %1685 = vmatmul.f32.gmra.mxu0 %v1540
          %v1686 = vpop.f32.mrf.mxu0
          %v1687 = vadd.f32 %v1667, %v1686
          %1688 = vdwg.mxu0
          %1689 = vst [vmem:[#allocation2] sm:$0xff] %v1687
        $region132: #{tpu_custom_call.1} parent=91 // pred_fallthru
          _
        %v1690 = vld [vmem:[#allocation2] sm:$0xff]
        %v1691 = vlaneseq
        %v1692 = vand.u32 %v1691, 127
        %vm1693 = vcmp.lt.s32.totalorder %v1692, 32
        %1694 = vadd.xlane.f32.xlu0 %v1690
        %v1695 = vpop.xlane.xlu0 %1694
        %v1696 = vmul.f32 %v1695, 0.03125
        %v1697 = vsub.f32 %v1690, %v1696
        %v1698 = vsel %vm1693, %v1697, 0.0
        %v1699 = vmul.f32 %v1698, %v1698
        %1700 = vadd.xlane.f32.xlu0 %v1699
        %v1701 = vpop.xlane.xlu0 %1700
        %v1702 = vmul.f32 %v1701, 0.03125
        %v1703 = vadd.f32 %v1702, 1e-05
        %v1704 = vrsqrt.pop %v1703
        %v1705 = vmul.f32 %v1704, %v1703
        %v1706 = vmul.f32 %v1705, %v1704
        %v1707 = vmul.f32 0.5, %v1706
        %v1708 = vsub.f32 1.5, %v1707
        %v1709 = vmul.f32 %v1704, %v1708
        %vm1710 = vweird.f32 %v1703
        %vm1711 = vweird.f32 %v1704
        %vm1712 = vmor %vm1710, %vm1711
        %v1713 = vsel %vm1712, %v1704, %v1709
        %v1714 = vmul.f32 %v1697, %v1713
        %v1715 = vld [vmem:[%s865] sm:$0x1]
        %v1717 = vperm.slane %v1715, 0
        %v1719 = vmul.f32 %v1714, %v1717
        %v1720 = vld [vmem:[%s868] sm:$0x1]
        %v1722 = vperm.slane %v1720, 0
        %v1724 = vadd.f32 %v1719, %v1722
        %v1725 = vld [vmem:[%s764] sm:$0xff]
        %v1726 = vld [vmem:[%s764 + $0x8] sm:$0xff]
        %v1727 = vld [vmem:[%s764 + $0x10] sm:$0xff]
        %v1728 = vld [vmem:[%s764 + $0x18] sm:$0xff]
        %v1729 = vld [vmem:[%s764 + $0x20] sm:$0xff]
        %v1730 = vld [vmem:[%s764 + $0x28] sm:$0xff]
        %v1731 = vld [vmem:[%s764 + $0x30] sm:$0xff]
        %v1732 = vld [vmem:[%s764 + $0x38] sm:$0xff]
        %v1733 = vld [vmem:[%s764 + $0x40] sm:$0xff]
        %v1734 = vld [vmem:[%s764 + $0x48] sm:$0xff]
        %v1735 = vld [vmem:[%s764 + $0x50] sm:$0xff]
        %v1736 = vld [vmem:[%s764 + $0x58] sm:$0xff]
        %v1737 = vld [vmem:[%s764 + $0x60] sm:$0xff]
        %v1738 = vld [vmem:[%s764 + $0x68] sm:$0xff]
        %v1739 = vld [vmem:[%s764 + $0x70] sm:$0xff]
        %v1740 = vld [vmem:[%s764 + $0x78] sm:$0xff]
        %v1741 = vld [vmem:[%s871] sm:$0x1]
        %v1743 = vperm.slane %v1741, 0
        %1745 = vmatpush.msra.mxu0 %v1740
        %1746 = vmatpush.msra.mxu0 %v1739
        %1747 = vmatpush.msra.mxu0 %v1738
        %1748 = vmatpush.msra.mxu0 %v1737
        %1749 = vmatpush.msra.mxu0 %v1736
        %1750 = vmatpush.msra.mxu0 %v1735
        %1751 = vmatpush.msra.mxu0 %v1734
        %1752 = vmatpush.msra.mxu0 %v1733
        %1753 = vmatpush.msra.mxu0 %v1732
        %1754 = vmatpush.msra.mxu0 %v1731
        %1755 = vmatpush.msra.mxu0 %v1730
        %1756 = vmatpush.msra.mxu0 %v1729
        %1757 = vmatpush.msra.mxu0 %v1728
        %1758 = vmatpush.msra.mxu0 %v1727
        %1759 = vmatpush.msra.mxu0 %v1726
        %1760 = vmatpush.msra.mxu0 %v1725
        %1761 = vmatmul.f32.gmra.mxu0 %v1724
        %v1762 = vpop.f32.mrf.mxu0
        %v1763 = vadd.f32 %v1743, %v1762
        %1764 = vdwg.mxu0
        %v1765 = vmax.f32 %v1763, 0.0
        %v1766 = vld [vmem:[%s774] sm:$0xff]
        %v1767 = vld [vmem:[%s774 + $0x8] sm:$0xff]
        %v1768 = vld [vmem:[%s774 + $0x10] sm:$0xff]
        %v1769 = vld [vmem:[%s774 + $0x18] sm:$0xff]
        %v1770 = vld [vmem:[%s774 + $0x20] sm:$0xff]
        %v1771 = vld [vmem:[%s774 + $0x28] sm:$0xff]
        %v1772 = vld [vmem:[%s774 + $0x30] sm:$0xff]
        %v1773 = vld [vmem:[%s774 + $0x38] sm:$0xff]
        %v1774 = vld [vmem:[%s774 + $0x40] sm:$0xff]
        %v1775 = vld [vmem:[%s774 + $0x48] sm:$0xff]
        %v1776 = vld [vmem:[%s774 + $0x50] sm:$0xff]
        %v1777 = vld [vmem:[%s774 + $0x58] sm:$0xff]
        %v1778 = vld [vmem:[%s774 + $0x60] sm:$0xff]
        %v1779 = vld [vmem:[%s774 + $0x68] sm:$0xff]
        %v1780 = vld [vmem:[%s774 + $0x70] sm:$0xff]
        %v1781 = vld [vmem:[%s774 + $0x78] sm:$0xff]
        %v1782 = vld [vmem:[%s874] sm:$0x1]
        %v1784 = vperm.slane %v1782, 0
        %1786 = vmatpush.msra.mxu0 %v1781
        %1787 = vmatpush.msra.mxu0 %v1780
        %1788 = vmatpush.msra.mxu0 %v1779
        %1789 = vmatpush.msra.mxu0 %v1778
        %1790 = vmatpush.msra.mxu0 %v1777
        %1791 = vmatpush.msra.mxu0 %v1776
        %1792 = vmatpush.msra.mxu0 %v1775
        %1793 = vmatpush.msra.mxu0 %v1774
        %1794 = vmatpush.msra.mxu0 %v1773
        %1795 = vmatpush.msra.mxu0 %v1772
        %1796 = vmatpush.msra.mxu0 %v1771
        %1797 = vmatpush.msra.mxu0 %v1770
        %1798 = vmatpush.msra.mxu0 %v1769
        %1799 = vmatpush.msra.mxu0 %v1768
        %1800 = vmatpush.msra.mxu0 %v1767
        %1801 = vmatpush.msra.mxu0 %v1766
        %1802 = vmatmul.f32.gmra.mxu0 %v1765
        %v1803 = vpop.f32.mrf.mxu0
        %v1804 = vadd.f32 %v1784, %v1803
        %1805 = vdwg.mxu0
        %v1806 = vadd.f32 %v1690, %v1804
        %1807 = vst [vmem:[#allocation2] sm:$0xff] %v1806
        %p1808 = scmp.eq.s32.totalorder %s42, 1
        // Predicated region
        $region133: #{tpu_custom_call.1} parent=91 // pred_check
          %p1809 = pneg %p1808
        $region134: #{tpu_custom_call.1} parent=91 // pred_check_branch
          %1811 = sbr.rel (%p1809) target = $region136
        $region135: #{tpu_custom_call.1} parent=91 // pred_region
          %v1812 = vld [vmem:[#allocation2] sm:$0xff]
          %1813 = vadd.xlane.f32.xlu0 %v1812
          %v1814 = vpop.xlane.xlu0 %1813
          %v1815 = vmul.f32 %v1814, 0.03125
          %v1816 = vsub.f32 %v1812, %v1815
          %v1817 = vsel %vm1693, %v1816, 0.0
          %v1818 = vmul.f32 %v1817, %v1817
          %1819 = vadd.xlane.f32.xlu0 %v1818
          %v1820 = vpop.xlane.xlu0 %1819
          %v1821 = vmul.f32 %v1820, 0.03125
          %v1822 = vadd.f32 %v1821, 1e-05
          %v1823 = vrsqrt.pop %v1822
          %v1824 = vmul.f32 %v1823, %v1822
          %v1825 = vmul.f32 %v1824, %v1823
          %v1826 = vmul.f32 0.5, %v1825
          %v1827 = vsub.f32 1.5, %v1826
          %v1828 = vmul.f32 %v1823, %v1827
          %vm1829 = vweird.f32 %v1822
          %vm1830 = vweird.f32 %v1823
          %vm1831 = vmor %vm1829, %vm1830
          %v1832 = vsel %vm1831, %v1823, %v1828
          %v1833 = vmul.f32 %v1816, %v1832
          %1834 = vst [vmem:[#allocation17] sm:$0xff] %v1833
          %v1835 = vld [vmem:[#allocation16] sm:$0xff]
          %v1836 = vld [vmem:[#allocation16 + $0x8] sm:$0xff]
          %v1837 = vld [vmem:[#allocation16 + $0x10] sm:$0xff]
          %v1838 = vld [vmem:[#allocation16 + $0x18] sm:$0xff]
          %v1839 = vld [vmem:[#allocation16 + $0x20] sm:$0xff]
          %v1840 = vld [vmem:[#allocation16 + $0x28] sm:$0xff]
          %v1841 = vld [vmem:[#allocation16 + $0x30] sm:$0xff]
          %v1842 = vld [vmem:[#allocation16 + $0x38] sm:$0xff]
          %v1843 = vld [vmem:[#allocation16 + $0x40] sm:$0xff]
          %v1844 = vld [vmem:[#allocation16 + $0x48] sm:$0xff]
          %v1845 = vld [vmem:[#allocation16 + $0x50] sm:$0xff]
          %v1846 = vld [vmem:[#allocation16 + $0x58] sm:$0xff]
          %v1847 = vld [vmem:[#allocation16 + $0x60] sm:$0xff]
          %v1848 = vld [vmem:[#allocation16 + $0x68] sm:$0xff]
          %v1849 = vld [vmem:[#allocation16 + $0x70] sm:$0xff]
          %v1850 = vld [vmem:[#allocation16 + $0x78] sm:$0xff]
          %v1851 = vld [vmem:[%s17] sm:$0x1]
          %v1853 = vperm.slane %v1851, 0
          %1855 = vmatpush.msra.mxu0 %v1850
          %1856 = vmatpush.msra.mxu0 %v1849
          %1857 = vmatpush.msra.mxu0 %v1848
          %1858 = vmatpush.msra.mxu0 %v1847
          %1859 = vmatpush.msra.mxu0 %v1846
          %1860 = vmatpush.msra.mxu0 %v1845
          %1861 = vmatpush.msra.mxu0 %v1844
          %1862 = vmatpush.msra.mxu0 %v1843
          %1863 = vmatpush.msra.mxu0 %v1842
          %1864 = vmatpush.msra.mxu0 %v1841
          %1865 = vmatpush.msra.mxu0 %v1840
          %1866 = vmatpush.msra.mxu0 %v1839
          %1867 = vmatpush.msra.mxu0 %v1838
          %1868 = vmatpush.msra.mxu0 %v1837
          %1869 = vmatpush.msra.mxu0 %v1836
          %1870 = vmatpush.msra.mxu0 %v1835
          %1871 = vmatmul.f32.gmra.mxu0 %v1833
          %v1872 = vpop.f32.mrf.mxu0
          %v1873 = vadd.f32 %v1853, %v1872
          %1874 = vdwg.mxu0
          %1875 = vst [vmem:[#allocation18] sm:$0xff] %v1873
        $region136: #{tpu_custom_call.1} parent=91 // pred_fallthru
          _
        // Predicated region
        $region137: #{tpu_custom_call.1} parent=91 // pred_check
          %p1876 = pneg %p490
        $region138: #{tpu_custom_call.1} parent=91 // pred_check_branch
          %1878 = sbr.rel (%p1876) target = $region140
        $region139: #{tpu_custom_call.1} parent=91 // pred_region
          %1880 = vsyncadd [#allocation5], 0
          %s1881 = smul.addr %s41, 8
          %s1882 = scalar_lea.hbm %s18, %s1881
          %s1884 = sshll.u32 [#allocation17], 4
          %s1885 = int_to_ptr.vmem [resolvable:$true] %s1884
          %s1886 = sshll.u32 %s1882, 4
          %s1887 = int_to_ptr.hbm [resolvable:$true] %s1886
          %1889 = dma.vmem_to_hbm [thread:$0]  %s1885, 128, %s1887, [#allocation5]
        $region140: #{tpu_custom_call.1} parent=91 // pred_fallthru
          _
        // Predicated region
        $region141: #{tpu_custom_call.1} parent=91 // pred_check
          %p1890 = pneg %p516
        $region142: #{tpu_custom_call.1} parent=91 // pred_check_branch
          %1892 = sbr.rel (%p1890) target = $region144
        $region143: #{tpu_custom_call.1} parent=91 // pred_region
          %1894 = vsyncadd [#allocation19], 0
          %s1895 = smul.addr %s41, 8
          %s1896 = scalar_lea.hbm %s19, %s1895
          %s1898 = sshll.u32 [#allocation18], 4
          %s1899 = int_to_ptr.vmem [resolvable:$true] %s1898
          %s1900 = sshll.u32 %s1896, 4
          %s1901 = int_to_ptr.hbm [resolvable:$true] %s1900
          %1903 = dma.vmem_to_hbm [thread:$0]  %s1899, 128, %s1901, [#allocation19]
        $region144: #{tpu_custom_call.1} parent=91 // pred_fallthru
          _
        // Predicated region
        $region145: #{tpu_custom_call.1} parent=91 // pred_check
          %p1904 = pneg %p490
        $region146: #{tpu_custom_call.1} parent=91 // pred_check_branch
          %1906 = sbr.rel (%p1904) target = $region148
        $region147: #{tpu_custom_call.1} parent=91 // pred_region
          %1908 = dma.done [#allocation5], 128
        $region148: #{tpu_custom_call.1} parent=91 // pred_fallthru
          _
        // Predicated region
        $region149: #{tpu_custom_call.1} parent=91 // pred_check
          %p1909 = pneg %p516
        $region150: #{tpu_custom_call.1} parent=91 // pred_check_branch
          %1911 = sbr.rel (%p1909) target = $region152
        $region151: #{tpu_custom_call.1} parent=91 // pred_region
          %1913 = dma.done [#allocation19], 128
        $region152: #{tpu_custom_call.1} parent=91 // pred_fallthru
          _
      $region92: #{tpu_custom_call.1} parent=5 // pred_fallthru
        _
      %p1914 = scmp.le.s32.totalorder 2, %s32
      // Predicated region
      $region153: #{tpu_custom_call.1} parent=5 // pred_check
        %p1915 = pneg %p1914
      $region154: #{tpu_custom_call.1} parent=5 // pred_check_branch
        %1917 = sbr.rel (%p1915) target = $region156
      $region155: #{tpu_custom_call.1} parent=5 // pred_region
        %s1918 = ssub.s32 %s32, 2
      $region156: #{tpu_custom_call.1} parent=5 // pred_fallthru
        _
    $region6: #{tpu_custom_call.1} parent=1 // loop_footer
      %s36 = sadd.s32 1, %s32
    $region7: #{tpu_custom_call.1} parent=1 // loop_footer_branch
      %31 = sbr.rel target = $region3
    $region8: #{tpu_custom_call.1} parent=1 // loop_exit
      _
    %1919 = vsyncpa [#allocation4], 1
    %s1920 = scalar_lea.sflag [#allocation4], 1
    %1921 = vsyncpa %s1920, 1
    %1922 = vsyncpa [#allocation7], 1
    %1923 = vsyncpa [#allocation10], 1
    %1924 = vsyncpa [#allocation13], 1
    %1925 = vsyncpa [#allocation5], 1
    %s1926 = scalar_lea.sflag [#allocation5], 1
    %1927 = vsyncpa %s1926, 1
    %1928 = vsyncpa [#allocation19], 1

</llo_original>
